<compile_context>
chip_gen: v5e
topology: v5e:2x2
jax: 0.10.0
libtpu: 0.0.40
codegen_flags: <defaults>
</compile_context>

<pallas_src>
import jax
import jax.numpy as jnp
from jax.experimental import pallas as pl
from jax.experimental.pallas import tpu as pltpu

VERY_SMALL_NUMBER = 1e-12
LN_EPS = 1e-5
NUM_CLASSES = 3


# ---------------------------------------------------------------------------
# Fused kernel: graph structures + 4 x (GCN + residual + LayerNorm) +
#               aspect-masked mean pooling.  One grid step = Bt examples.
# TODO(synk): the upstream GCN class is not in the provided source; the
#             standard ReLU(A @ X @ W + b) graph convolution is used here.
# ---------------------------------------------------------------------------
def _absa_fused_kernel(rel_ref, arc_ref, x_ref, m_ref, am_ref,
                       w_ref, b_ref, ln_ref, pooled_ref):
    rel = rel_ref[...].astype(jnp.float32)     # (Bt, N, N)  bf16 -> f32
    arc = arc_ref[...].astype(jnp.float32)     # (Bt, N, N)
    x = x_ref[...].astype(jnp.float32)         # (Bt, N, H)
    m = m_ref[...][:, 0, :]                    # (Bt, N)  attention mask (f32)
    am = am_ref[...][:, 0, :]                  # (Bt, N)  aspect mask   (f32)

    bt, n, h = x.shape

    # identity * VERY_SMALL_NUMBER ("self loop for pad")
    row_i = jax.lax.broadcasted_iota(jnp.int32, (n, n), 0)
    col_i = jax.lax.broadcasted_iota(jnp.int32, (n, n), 1)
    eye_eps = ((row_i == col_i).astype(jnp.float32) * VERY_SMALL_NUMBER)[None]

    mask2d = m[:, :, None] * m[:, None, :]     # (Bt, N, N)

    def row_norm(adj):
        a = adj * mask2d + eye_eps
        # exact reciprocal on the tiny (Bt, N, 1) row sums: avoids compounding
        # the approx-EUP error through the nested normalization.
        inv = 1.0 / jnp.sum(a, axis=-1, keepdims=True)
        a = a * inv
        return a * mask2d + eye_eps

    rel_s = row_norm(rel)
    arc_s = row_norm(arc)
    rel_sT = row_norm(jnp.swapaxes(rel, -1, -2))
    arc_sT = row_norm(jnp.swapaxes(arc, -1, -2))
    struc = row_norm(rel_s + arc_s).astype(jnp.bfloat16)
    strucT = row_norm(rel_sT + arc_sT).astype(jnp.bfloat16)

    gamma = ln_ref[0][None, None, :]           # (1, 1, H)
    beta = ln_ref[1][None, None, :]

    def layer_norm(hh):
        mu = jnp.mean(hh, axis=-1, keepdims=True)
        var = jnp.mean((hh - mu) ** 2, axis=-1, keepdims=True)
        return (hh - mu) * jax.lax.rsqrt(var + LN_EPS) * gamma + beta

    def gcn(hh, adj_bf, layer):
        w = w_ref[layer]                       # (H, H) bf16
        bvec = b_ref[layer]                    # (H,)   f32
        # Fold batch into the matmul M dimension: one (Bt*N, H) x (H, H) dot.
        # N is padded to a multiple of 16 in the wrapper so these reshapes are
        # layout-preserving (no VMEM repacks).
        hw = jnp.dot(hh.reshape(bt * n, h).astype(jnp.bfloat16), w,
                     preferred_element_type=jnp.float32).reshape(bt, n, h)
        # Per-example A @ (XW).
        ahw = jnp.einsum('bij,bjh->bih', adj_bf, hw.astype(jnp.bfloat16),
                         preferred_element_type=jnp.float32)
        return jnp.maximum(ahw + bvec[None, None, :], 0.0)

    # All residuals add the original word_encoding, matching the reference.
    hs = layer_norm(gcn(x, struc, 0) + x)
    hs = layer_norm(gcn(hs, strucT, 1) + x)
    hs = layer_norm(gcn(hs, struc, 2) + x)
    hs = layer_norm(gcn(hs, strucT, 3) + x)

    # dropout = identity (eval mode); aspect-masked mean pooling
    out = hs * am[:, :, None]                  # (Bt, N, H)
    denom = jnp.maximum(jnp.sum(am, axis=-1, keepdims=True),
                        VERY_SMALL_NUMBER)     # (Bt, 1)  NaN guard for pad rows
    pooled_ref[0] = jnp.sum(out, axis=1) / denom   # (Bt, H)


# ---------------------------------------------------------------------------
# Block-size heuristic (static shapes only)
# ---------------------------------------------------------------------------
def _choose_bt(B, N, H):
    """Examples per grid step.

    Target Bt*N ~= 768 (>= 512) so the folded (Bt*N, H) x (H, H) matmul fills
    the MXU M dimension, capped by a conservative VMEM budget that fits v7x's
    64 MiB (also valid for v5e/v6e).  Keep >= 2 grid steps when B >= 2 so
    v7x's two TensorCores both get work via the "parallel" grid axis.
    Prefer a Bt that divides B to avoid a jnp.pad HBM copy of every input.
    """
    target = max(1, -(-768 // N))                       # ceil
    per_ex = (2 * (2 * N * N + N * H) * 2               # bf16 rel/arc/x, 2 bufs
              + 8 * N * N * 4                           # f32 adjacency temps
              + 4 * N * H * 4)                          # f32 activation temps
    fixed = 2 * (4 * H * H * 2 + 4 * H * 4 + 2 * H * 4) # shared weights, 2 bufs
    budget = 40 * 1024 * 1024
    bt = max(1, min(target, max(1, (budget - fixed) // max(per_ex, 1)), B))
    if B >= 2:
        bt = min(bt, -(-B // 2))                        # nb >= 2 grid steps
    for cand in range(int(bt), 0, -1):                  # prefer divisor of B
        if B % cand == 0 and cand * 2 >= bt:
            return cand
    return int(bt)


# ---------------------------------------------------------------------------
# Wrapper
# ---------------------------------------------------------------------------
@jax.jit
def absa_forward(rel_score, arc_score, word_encoding, token_start_idxs,
                 aspect_mask, targets, params):
    f32 = jnp.float32
    bf16 = jnp.bfloat16
    B, N, _, R = rel_score.shape
    H = word_encoding.shape[-1]

    # word_level_seq_len & word_level_attention_mask (glue, plain JAX)
    seq_len = jnp.sum((token_start_idxs > 0).astype(jnp.int32), axis=-1)
    attn_mask = (jnp.arange(N)[None, :] < seq_len[:, None]).astype(f32)

    # relation_linear (Linear(45,1)) + squeeze + ReLU done lane-dense in XLA,
    # so the kernel never sees the R=45 lane axis.
    rel = jnp.maximum(
        jnp.einsum('bnmr,r->bnm', rel_score.astype(f32), params["rel_w"])
        + params["rel_b"][0], 0.0)

    # Pad N (word axis) to a multiple of 16 so the in-kernel reshapes are
    # layout-preserving for bf16.  Padded positions are masked out.
    Np = -(-N // 16) * 16

    def pad_nn(a):                                       # (B, N, N)
        return a if Np == N else jnp.pad(a, ((0, 0), (0, Np - N), (0, Np - N)))

    def pad_n_axis(a, axis):
        if Np == N:
            return a
        pw = [(0, 0)] * a.ndim
        pw[axis] = (0, Np - N)
        return jnp.pad(a, pw)

    # Cast the big streams to bf16 BEFORE any padding (halves copy traffic).
    rel_b = pad_nn(rel.astype(bf16))
    arc_b = pad_nn(arc_score.astype(bf16))
    x_b = pad_n_axis(word_encoding.astype(bf16), axis=1)
    m_b = pad_n_axis(attn_mask, axis=1)
    am_b = pad_n_axis(aspect_mask.astype(f32), axis=1)

    Bt = _choose_bt(B, Np, H)
    nb = -(-B // Bt)
    B_pad = nb * Bt

    def pad_b(a):                                        # batch pad (fallback only)
        if B_pad == B:
            return a
        return jnp.pad(a, ((0, B_pad - B),) + ((0, 0),) * (a.ndim - 1))

    rel_p = pad_b(rel_b)
    arc_p = pad_b(arc_b)
    x_p = pad_b(x_b)
    m_p = pad_b(m_b).reshape(B_pad, 1, Np)
    am_p = pad_b(am_b).reshape(B_pad, 1, Np)

    # Pack weights: bf16 GCN weights, f32 biases / LN.
    w_all = jnp.stack([params["w1"], params["w2"],
                       params["w3"], params["w4"]]).astype(bf16)      # (4,H,H)
    b_all = jnp.stack([params["b1"], params["b2"],
                       params["b3"], params["b4"]]).astype(f32)       # (4,H)
    ln_gb = jnp.stack([params["ln_g"], params["ln_b"]]).astype(f32)   # (2,H)

    batched = lambda shape: pl.BlockSpec(shape, lambda b: (b,) + (0,) * (len(shape) - 1))
    shared = lambda shape: pl.BlockSpec(shape, lambda b: (0,) * len(shape))

    pooled = pl.pallas_call(
        _absa_fused_kernel,
        grid=(nb,),
        in_specs=[
            batched((Bt, Np, Np)),      # rel  (relu(Linear) applied), bf16
            batched((Bt, Np, Np)),      # arc_score, bf16
            batched((Bt, Np, H)),       # word_encoding, bf16
            batched((Bt, 1, Np)),       # attention mask, f32
            batched((Bt, 1, Np)),       # aspect mask, f32
            shared((4, H, H)),          # packed GCN weights (bf16)
            shared((4, H)),             # packed GCN biases
            shared((2, H)),             # LayerNorm gamma/beta
        ],
        out_specs=pl.BlockSpec((1, Bt, H), lambda b: (b, 0, 0)),
        out_shape=jax.ShapeDtypeStruct((nb, Bt, H), f32),
        compiler_params=pltpu.CompilerParams(
            dimension_semantics=("parallel",),
            vmem_limit_bytes=48 * 1024 * 1024),   # fits v7x's 64 MiB VMEM
    )(rel_p, arc_p, x_p, m_p, am_p, w_all, b_all, ln_gb)

    pooled = pooled.reshape(B_pad, H)[:B]                 # (B, H), lane-dense

    # 3-class classifier + CrossEntropyLoss(reduction='mean') in the wrapper
    # (tiny; removes the padded-logits slab and a shared weight fetch).
    logits = pooled @ params["lin_w"].astype(f32) + params["lin_b"].astype(f32)
    lse = jax.nn.logsumexp(logits, axis=-1)
    picked = jnp.take_along_axis(logits, targets[:, None], axis=-1)[:, 0]
    loss = jnp.mean(lse - picked)
    return logits, loss


# ---------------------------------------------------------------------------
# Demo
# ---------------------------------------------------------------------------
if __name__ == "__main__":
    B, N, R, H = 2, 8, 45, 32      # small shapes; H stands in for hidden_dim=768

    key = jax.random.PRNGKey(0)
    keys = jax.random.split(key, 16)

    rel_score = jax.random.normal(keys[0], (B, N, N, R), jnp.float32)
    arc_score = jax.random.normal(keys[1], (B, N, N), jnp.float32)
    word_encoding = jax.random.normal(keys[2], (B, N, H), jnp.float32)

    # token_start_idxs > 0 for valid word positions (6 and 5 valid words)
    token_start_idxs = jnp.stack([
        jnp.array([1, 2, 3, 4, 5, 6, 0, 0], jnp.int32),
        jnp.array([1, 2, 3, 4, 5, 0, 0, 0], jnp.int32),
    ])
    aspect_mask = jnp.stack([
        jnp.array([0, 1, 1, 0, 0, 0, 0, 0], jnp.float32),
        jnp.array([0, 0, 1, 1, 1, 0, 0, 0], jnp.float32),
    ])
    targets = jnp.array([0, 2], jnp.int32)

    scale = 0.05
    params = {
        "rel_w": jax.random.normal(keys[3], (R,), jnp.float32) * scale,
        "rel_b": jax.random.normal(keys[4], (1,), jnp.float32) * scale,
        "w1": jax.random.normal(keys[5], (H, H), jnp.float32) * scale,
        "b1": jnp.zeros((H,), jnp.float32),
        "w2": jax.random.normal(keys[6], (H, H), jnp.float32) * scale,
        "b2": jnp.zeros((H,), jnp.float32),
        "w3": jax.random.normal(keys[7], (H, H), jnp.float32) * scale,
        "b3": jnp.zeros((H,), jnp.float32),
        "w4": jax.random.normal(keys[8], (H, H), jnp.float32) * scale,
        "b4": jnp.zeros((H,), jnp.float32),
        "ln_g": jnp.ones((H,), jnp.float32),
        "ln_b": jnp.zeros((H,), jnp.float32),
        "lin_w": jax.random.normal(keys[9], (H, 3), jnp.float32) * scale,
        "lin_b": jnp.zeros((3,), jnp.float32),
    }

    logits, loss = absa_forward(rel_score, arc_score, word_encoding,
                                token_start_idxs, aspect_mask, targets, params)
    jax.block_until_ready((logits, loss))
    assert logits.shape == (B, 3) and loss.shape == ()
    assert bool(jnp.all(jnp.isfinite(logits))) and bool(jnp.isfinite(loss))
    print("KERNEL_OK")
</pallas_src>

<mosaic_0001>
module attributes {stable_mosaic.version = 11 : i64} {
  func.func @_absa_fused_kernel(%arg0: i32, %arg1: memref<1x16x16xbf16, #tpu.memory_space<vmem>>, %arg2: memref<1x16x16xbf16, #tpu.memory_space<vmem>>, %arg3: memref<1x16x32xbf16, #tpu.memory_space<vmem>>, %arg4: memref<1x1x16xf32, #tpu.memory_space<vmem>>, %arg5: memref<1x1x16xf32, #tpu.memory_space<vmem>>, %arg6: memref<4x32x32xbf16, #tpu.memory_space<vmem>>, %arg7: memref<4x32xf32, #tpu.memory_space<vmem>>, %arg8: memref<2x32xf32, #tpu.memory_space<vmem>>, %arg9: memref<1x1x32xf32, #tpu.memory_space<vmem>>) attributes {dimension_semantics = [#tpu.dimension_semantics<parallel>], iteration_bounds = array<i64: 2>, scalar_prefetch = 0 : i64, scratch_operands = 0 : i64, tpu.core_type = #tpu.core_type<tc>, window_params = [{transform_indices = @transform_0, window_bounds = array<i64: 1, 16, 16>}, {transform_indices = @transform_1, window_bounds = array<i64: 1, 16, 16>}, {transform_indices = @transform_2, window_bounds = array<i64: 1, 16, 32>}, {transform_indices = @transform_3, window_bounds = array<i64: 1, 1, 16>}, {transform_indices = @transform_4, window_bounds = array<i64: 1, 1, 16>}, {pipeline_mode = #tpu.pipeline_mode<synchronous>, transform_indices = @transform_5, window_bounds = array<i64: 4, 32, 32>}, {pipeline_mode = #tpu.pipeline_mode<synchronous>, transform_indices = @transform_6, window_bounds = array<i64: 4, 32>}, {pipeline_mode = #tpu.pipeline_mode<synchronous>, transform_indices = @transform_7, window_bounds = array<i64: 2, 32>}, {transform_indices = @transform_8, window_bounds = array<i64: 1, 1, 32>}]} {
    %c0 = arith.constant 0 : index
    %c0_0 = arith.constant 0 : index
    %c0_1 = arith.constant 0 : index
    %0 = vector.load %arg1[%c0, %c0_0, %c0_1] : memref<1x16x16xbf16, #tpu.memory_space<vmem>>, vector<1x16x16xbf16>
    %1 = arith.extf %0 : vector<1x16x16xbf16> to vector<1x16x16xf32>
    %c0_2 = arith.constant 0 : index
    %c0_3 = arith.constant 0 : index
    %c0_4 = arith.constant 0 : index
    %2 = vector.load %arg2[%c0_2, %c0_3, %c0_4] : memref<1x16x16xbf16, #tpu.memory_space<vmem>>, vector<1x16x16xbf16>
    %3 = arith.extf %2 : vector<1x16x16xbf16> to vector<1x16x16xf32>
    %c0_5 = arith.constant 0 : index
    %c0_6 = arith.constant 0 : index
    %c0_7 = arith.constant 0 : index
    %4 = vector.load %arg3[%c0_5, %c0_6, %c0_7] : memref<1x16x32xbf16, #tpu.memory_space<vmem>>, vector<1x16x32xbf16>
    %5 = arith.extf %4 : vector<1x16x32xbf16> to vector<1x16x32xf32>
    %c0_8 = arith.constant 0 : index
    %c0_9 = arith.constant 0 : index
    %c0_10 = arith.constant 0 : index
    %6 = vector.load %arg4[%c0_8, %c0_9, %c0_10] : memref<1x1x16xf32, #tpu.memory_space<vmem>>, vector<1x1x16xf32>
    %7 = vector.shape_cast %6 : vector<1x1x16xf32> to vector<1x16xf32>
    %c0_11 = arith.constant 0 : index
    %c0_12 = arith.constant 0 : index
    %c0_13 = arith.constant 0 : index
    %8 = vector.load %arg5[%c0_11, %c0_12, %c0_13] : memref<1x1x16xf32, #tpu.memory_space<vmem>>, vector<1x1x16xf32>
    %9 = vector.shape_cast %8 : vector<1x1x16xf32> to vector<1x16xf32>
    %10 = tpu.iota {dimensions = array<i32: 0>} : vector<16x16xi32>
    %11 = tpu.iota {dimensions = array<i32: 1>} : vector<16x16xi32>
    %12 = arith.cmpi eq, %10, %11 : vector<16x16xi32>
    %13 = arith.extui %12 : vector<16x16xi1> to vector<16x16xi32>
    %14 = arith.sitofp %13 : vector<16x16xi32> to vector<16x16xf32>
    %cst = arith.constant 9.99999996E-13 : f32
    %15 = vector.broadcast %cst : f32 to vector<16x16xf32>
    %16 = arith.mulf %14, %15 : vector<16x16xf32>
    %17 = vector.shape_cast %16 : vector<16x16xf32> to vector<1x16x16xf32>
    %18 = vector.shape_cast %7 : vector<1x16xf32> to vector<1x16x1xf32>
    %19 = vector.shape_cast %7 : vector<1x16xf32> to vector<1x1x16xf32>
    %20 = vector.broadcast %18 : vector<1x16x1xf32> to vector<1x16x16xf32>
    %21 = vector.broadcast %19 : vector<1x1x16xf32> to vector<1x16x16xf32>
    %22 = arith.mulf %20, %21 : vector<1x16x16xf32>
    %23 = arith.mulf %1, %22 : vector<1x16x16xf32>
    %24 = arith.addf %23, %17 : vector<1x16x16xf32>
    %cst_14 = arith.constant dense<0.000000e+00> : vector<1x16xf32>
    %25 = vector.multi_reduction <add>, %24, %cst_14 [2] : vector<1x16x16xf32> to vector<1x16xf32>
    %26 = vector.shape_cast %25 : vector<1x16xf32> to vector<1x16x1xf32>
    %cst_15 = arith.constant 1.000000e+00 : f32
    %27 = vector.broadcast %cst_15 : f32 to vector<1x16x1xf32>
    %28 = arith.divf %27, %26 : vector<1x16x1xf32>
    %29 = vector.broadcast %28 : vector<1x16x1xf32> to vector<1x16x16xf32>
    %30 = arith.mulf %24, %29 : vector<1x16x16xf32>
    %31 = arith.mulf %30, %22 : vector<1x16x16xf32>
    %32 = arith.addf %31, %17 : vector<1x16x16xf32>
    %33 = arith.mulf %3, %22 : vector<1x16x16xf32>
    %34 = arith.addf %33, %17 : vector<1x16x16xf32>
    %cst_16 = arith.constant dense<0.000000e+00> : vector<1x16xf32>
    %35 = vector.multi_reduction <add>, %34, %cst_16 [2] : vector<1x16x16xf32> to vector<1x16xf32>
    %36 = vector.shape_cast %35 : vector<1x16xf32> to vector<1x16x1xf32>
    %cst_17 = arith.constant 1.000000e+00 : f32
    %37 = vector.broadcast %cst_17 : f32 to vector<1x16x1xf32>
    %38 = arith.divf %37, %36 : vector<1x16x1xf32>
    %39 = vector.broadcast %38 : vector<1x16x1xf32> to vector<1x16x16xf32>
    %40 = arith.mulf %34, %39 : vector<1x16x16xf32>
    %41 = arith.mulf %40, %22 : vector<1x16x16xf32>
    %42 = arith.addf %41, %17 : vector<1x16x16xf32>
    %43 = tpu.transpose %1, [0, 2, 1] : vector<1x16x16xf32> -> vector<1x16x16xf32>
    %44 = arith.mulf %43, %22 : vector<1x16x16xf32>
    %45 = arith.addf %44, %17 : vector<1x16x16xf32>
    %cst_18 = arith.constant dense<0.000000e+00> : vector<1x16xf32>
    %46 = vector.multi_reduction <add>, %45, %cst_18 [2] : vector<1x16x16xf32> to vector<1x16xf32>
    %47 = vector.shape_cast %46 : vector<1x16xf32> to vector<1x16x1xf32>
    %cst_19 = arith.constant 1.000000e+00 : f32
    %48 = vector.broadcast %cst_19 : f32 to vector<1x16x1xf32>
    %49 = arith.divf %48, %47 : vector<1x16x1xf32>
    %50 = vector.broadcast %49 : vector<1x16x1xf32> to vector<1x16x16xf32>
    %51 = arith.mulf %45, %50 : vector<1x16x16xf32>
    %52 = arith.mulf %51, %22 : vector<1x16x16xf32>
    %53 = arith.addf %52, %17 : vector<1x16x16xf32>
    %54 = tpu.transpose %3, [0, 2, 1] : vector<1x16x16xf32> -> vector<1x16x16xf32>
    %55 = arith.mulf %54, %22 : vector<1x16x16xf32>
    %56 = arith.addf %55, %17 : vector<1x16x16xf32>
    %cst_20 = arith.constant dense<0.000000e+00> : vector<1x16xf32>
    %57 = vector.multi_reduction <add>, %56, %cst_20 [2] : vector<1x16x16xf32> to vector<1x16xf32>
    %58 = vector.shape_cast %57 : vector<1x16xf32> to vector<1x16x1xf32>
    %cst_21 = arith.constant 1.000000e+00 : f32
    %59 = vector.broadcast %cst_21 : f32 to vector<1x16x1xf32>
    %60 = arith.divf %59, %58 : vector<1x16x1xf32>
    %61 = vector.broadcast %60 : vector<1x16x1xf32> to vector<1x16x16xf32>
    %62 = arith.mulf %56, %61 : vector<1x16x16xf32>
    %63 = arith.mulf %62, %22 : vector<1x16x16xf32>
    %64 = arith.addf %63, %17 : vector<1x16x16xf32>
    %65 = arith.addf %32, %42 : vector<1x16x16xf32>
    %66 = arith.mulf %65, %22 : vector<1x16x16xf32>
    %67 = arith.addf %66, %17 : vector<1x16x16xf32>
    %cst_22 = arith.constant dense<0.000000e+00> : vector<1x16xf32>
    %68 = vector.multi_reduction <add>, %67, %cst_22 [2] : vector<1x16x16xf32> to vector<1x16xf32>
    %69 = vector.shape_cast %68 : vector<1x16xf32> to vector<1x16x1xf32>
    %cst_23 = arith.constant 1.000000e+00 : f32
    %70 = vector.broadcast %cst_23 : f32 to vector<1x16x1xf32>
    %71 = arith.divf %70, %69 : vector<1x16x1xf32>
    %72 = vector.broadcast %71 : vector<1x16x1xf32> to vector<1x16x16xf32>
    %73 = arith.mulf %67, %72 : vector<1x16x16xf32>
    %74 = arith.mulf %73, %22 : vector<1x16x16xf32>
    %75 = arith.addf %74, %17 : vector<1x16x16xf32>
    %76 = arith.truncf %75 : vector<1x16x16xf32> to vector<1x16x16xbf16>
    %77 = arith.addf %53, %64 : vector<1x16x16xf32>
    %78 = arith.mulf %77, %22 : vector<1x16x16xf32>
    %79 = arith.addf %78, %17 : vector<1x16x16xf32>
    %cst_24 = arith.constant dense<0.000000e+00> : vector<1x16xf32>
    %80 = vector.multi_reduction <add>, %79, %cst_24 [2] : vector<1x16x16xf32> to vector<1x16xf32>
    %81 = vector.shape_cast %80 : vector<1x16xf32> to vector<1x16x1xf32>
    %cst_25 = arith.constant 1.000000e+00 : f32
    %82 = vector.broadcast %cst_25 : f32 to vector<1x16x1xf32>
    %83 = arith.divf %82, %81 : vector<1x16x1xf32>
    %84 = vector.broadcast %83 : vector<1x16x1xf32> to vector<1x16x16xf32>
    %85 = arith.mulf %79, %84 : vector<1x16x16xf32>
    %86 = arith.mulf %85, %22 : vector<1x16x16xf32>
    %87 = arith.addf %86, %17 : vector<1x16x16xf32>
    %88 = arith.truncf %87 : vector<1x16x16xf32> to vector<1x16x16xbf16>
    %c0_26 = arith.constant 0 : index
    %c0_27 = arith.constant 0 : index
    %89 = vector.load %arg8[%c0_26, %c0_27] : memref<2x32xf32, #tpu.memory_space<vmem>>, vector<1x32xf32>
    %90 = vector.shape_cast %89 : vector<1x32xf32> to vector<32xf32>
    %91 = vector.shape_cast %90 : vector<32xf32> to vector<1x1x32xf32>
    %c1 = arith.constant 1 : index
    %c0_28 = arith.constant 0 : index
    %92 = vector.load %arg8[%c1, %c0_28] : memref<2x32xf32, #tpu.memory_space<vmem>>, vector<1x32xf32>
    %93 = vector.shape_cast %92 : vector<1x32xf32> to vector<32xf32>
    %94 = vector.shape_cast %93 : vector<32xf32> to vector<1x1x32xf32>
    %c0_29 = arith.constant 0 : index
    %c0_30 = arith.constant 0 : index
    %c0_31 = arith.constant 0 : index
    %95 = vector.load %arg6[%c0_29, %c0_30, %c0_31] : memref<4x32x32xbf16, #tpu.memory_space<vmem>>, vector<1x32x32xbf16>
    %96 = vector.shape_cast %95 : vector<1x32x32xbf16> to vector<32x32xbf16>
    %c0_32 = arith.constant 0 : index
    %c0_33 = arith.constant 0 : index
    %97 = vector.load %arg7[%c0_32, %c0_33] : memref<4x32xf32, #tpu.memory_space<vmem>>, vector<1x32xf32>
    %98 = vector.shape_cast %97 : vector<1x32xf32> to vector<32xf32>
    %99 = vector.shape_cast %5 : vector<1x16x32xf32> to vector<16x32xf32>
    %100 = arith.truncf %99 : vector<16x32xf32> to vector<16x32xbf16>
    %cst_34 = arith.constant dense<0.000000e+00> : vector<16x32xf32>
    %101 = tpu.matmul %100, %96, %cst_34 {dimension_numbers = #tpu.dot_dimension_numbers<[1], [0], [0], [1], [0, 0, 1, 1], [], []>} : vector<16x32xbf16>, vector<32x32xbf16>, vector<16x32xf32> -> vector<16x32xf32>
    %102 = vector.shape_cast %101 : vector<16x32xf32> to vector<1x16x32xf32>
    %103 = arith.truncf %102 : vector<1x16x32xf32> to vector<1x16x32xbf16>
    "tpu.trace_start"() <{level = 10 : i32, message = "bij,bjh->bih"}> : () -> ()
    %cst_35 = arith.constant dense<0.000000e+00> : vector<1x16x32xf32>
    %104 = tpu.matmul %76, %103, %cst_35 {dimension_numbers = #tpu.dot_dimension_numbers<[2], [1], [1], [2], [0, 0, 0, 1, 1, 2], [0], [0]>} : vector<1x16x16xbf16>, vector<1x16x32xbf16>, vector<1x16x32xf32> -> vector<1x16x32xf32>
    "tpu.trace_stop"() : () -> ()
    %105 = vector.shape_cast %98 : vector<32xf32> to vector<1x1x32xf32>
    %106 = vector.broadcast %105 : vector<1x1x32xf32> to vector<1x16x32xf32>
    %107 = arith.addf %104, %106 : vector<1x16x32xf32>
    %cst_36 = arith.constant 0.000000e+00 : f32
    %108 = vector.broadcast %cst_36 : f32 to vector<1x16x32xf32>
    %109 = arith.maximumf %107, %108 : vector<1x16x32xf32>
    %110 = arith.addf %109, %5 : vector<1x16x32xf32>
    %cst_37 = arith.constant dense<0.000000e+00> : vector<1x16xf32>
    %111 = vector.multi_reduction <add>, %110, %cst_37 [2] : vector<1x16x32xf32> to vector<1x16xf32>
    %112 = vector.shape_cast %111 : vector<1x16xf32> to vector<1x16x1xf32>
    %cst_38 = arith.constant 3.200000e+01 : f32
    %113 = vector.broadcast %cst_38 : f32 to vector<1x16x1xf32>
    %114 = arith.divf %112, %113 : vector<1x16x1xf32>
    %115 = vector.broadcast %114 : vector<1x16x1xf32> to vector<1x16x32xf32>
    %116 = arith.subf %110, %115 : vector<1x16x32xf32>
    %117 = arith.mulf %116, %116 : vector<1x16x32xf32>
    %cst_39 = arith.constant dense<0.000000e+00> : vector<1x16xf32>
    %118 = vector.multi_reduction <add>, %117, %cst_39 [2] : vector<1x16x32xf32> to vector<1x16xf32>
    %119 = vector.shape_cast %118 : vector<1x16xf32> to vector<1x16x1xf32>
    %cst_40 = arith.constant 3.200000e+01 : f32
    %120 = vector.broadcast %cst_40 : f32 to vector<1x16x1xf32>
    %121 = arith.divf %119, %120 : vector<1x16x1xf32>
    %122 = vector.broadcast %114 : vector<1x16x1xf32> to vector<1x16x32xf32>
    %123 = arith.subf %110, %122 : vector<1x16x32xf32>
    %cst_41 = arith.constant 9.99999974E-6 : f32
    %124 = vector.broadcast %cst_41 : f32 to vector<1x16x1xf32>
    %125 = arith.addf %121, %124 : vector<1x16x1xf32>
    %126 = math.rsqrt %125 : vector<1x16x1xf32>
    %127 = vector.broadcast %126 : vector<1x16x1xf32> to vector<1x16x32xf32>
    %128 = arith.mulf %123, %127 : vector<1x16x32xf32>
    %129 = vector.broadcast %91 : vector<1x1x32xf32> to vector<1x16x32xf32>
    %130 = arith.mulf %128, %129 : vector<1x16x32xf32>
    %131 = vector.broadcast %94 : vector<1x1x32xf32> to vector<1x16x32xf32>
    %132 = arith.addf %130, %131 : vector<1x16x32xf32>
    %c1_42 = arith.constant 1 : index
    %c0_43 = arith.constant 0 : index
    %c0_44 = arith.constant 0 : index
    %133 = vector.load %arg6[%c1_42, %c0_43, %c0_44] : memref<4x32x32xbf16, #tpu.memory_space<vmem>>, vector<1x32x32xbf16>
    %134 = vector.shape_cast %133 : vector<1x32x32xbf16> to vector<32x32xbf16>
    %c1_45 = arith.constant 1 : index
    %c0_46 = arith.constant 0 : index
    %135 = vector.load %arg7[%c1_45, %c0_46] : memref<4x32xf32, #tpu.memory_space<vmem>>, vector<1x32xf32>
    %136 = vector.shape_cast %135 : vector<1x32xf32> to vector<32xf32>
    %137 = vector.shape_cast %132 : vector<1x16x32xf32> to vector<16x32xf32>
    %138 = arith.truncf %137 : vector<16x32xf32> to vector<16x32xbf16>
    %cst_47 = arith.constant dense<0.000000e+00> : vector<16x32xf32>
    %139 = tpu.matmul %138, %134, %cst_47 {dimension_numbers = #tpu.dot_dimension_numbers<[1], [0], [0], [1], [0, 0, 1, 1], [], []>} : vector<16x32xbf16>, vector<32x32xbf16>, vector<16x32xf32> -> vector<16x32xf32>
    %140 = vector.shape_cast %139 : vector<16x32xf32> to vector<1x16x32xf32>
    %141 = arith.truncf %140 : vector<1x16x32xf32> to vector<1x16x32xbf16>
    "tpu.trace_start"() <{level = 10 : i32, message = "bij,bjh->bih"}> : () -> ()
    %cst_48 = arith.constant dense<0.000000e+00> : vector<1x16x32xf32>
    %142 = tpu.matmul %88, %141, %cst_48 {dimension_numbers = #tpu.dot_dimension_numbers<[2], [1], [1], [2], [0, 0, 0, 1, 1, 2], [0], [0]>} : vector<1x16x16xbf16>, vector<1x16x32xbf16>, vector<1x16x32xf32> -> vector<1x16x32xf32>
    "tpu.trace_stop"() : () -> ()
    %143 = vector.shape_cast %136 : vector<32xf32> to vector<1x1x32xf32>
    %144 = vector.broadcast %143 : vector<1x1x32xf32> to vector<1x16x32xf32>
    %145 = arith.addf %142, %144 : vector<1x16x32xf32>
    %cst_49 = arith.constant 0.000000e+00 : f32
    %146 = vector.broadcast %cst_49 : f32 to vector<1x16x32xf32>
    %147 = arith.maximumf %145, %146 : vector<1x16x32xf32>
    %148 = arith.addf %147, %5 : vector<1x16x32xf32>
    %cst_50 = arith.constant dense<0.000000e+00> : vector<1x16xf32>
    %149 = vector.multi_reduction <add>, %148, %cst_50 [2] : vector<1x16x32xf32> to vector<1x16xf32>
    %150 = vector.shape_cast %149 : vector<1x16xf32> to vector<1x16x1xf32>
    %cst_51 = arith.constant 3.200000e+01 : f32
    %151 = vector.broadcast %cst_51 : f32 to vector<1x16x1xf32>
    %152 = arith.divf %150, %151 : vector<1x16x1xf32>
    %153 = vector.broadcast %152 : vector<1x16x1xf32> to vector<1x16x32xf32>
    %154 = arith.subf %148, %153 : vector<1x16x32xf32>
    %155 = arith.mulf %154, %154 : vector<1x16x32xf32>
    %cst_52 = arith.constant dense<0.000000e+00> : vector<1x16xf32>
    %156 = vector.multi_reduction <add>, %155, %cst_52 [2] : vector<1x16x32xf32> to vector<1x16xf32>
    %157 = vector.shape_cast %156 : vector<1x16xf32> to vector<1x16x1xf32>
    %cst_53 = arith.constant 3.200000e+01 : f32
    %158 = vector.broadcast %cst_53 : f32 to vector<1x16x1xf32>
    %159 = arith.divf %157, %158 : vector<1x16x1xf32>
    %160 = vector.broadcast %152 : vector<1x16x1xf32> to vector<1x16x32xf32>
    %161 = arith.subf %148, %160 : vector<1x16x32xf32>
    %cst_54 = arith.constant 9.99999974E-6 : f32
    %162 = vector.broadcast %cst_54 : f32 to vector<1x16x1xf32>
    %163 = arith.addf %159, %162 : vector<1x16x1xf32>
    %164 = math.rsqrt %163 : vector<1x16x1xf32>
    %165 = vector.broadcast %164 : vector<1x16x1xf32> to vector<1x16x32xf32>
    %166 = arith.mulf %161, %165 : vector<1x16x32xf32>
    %167 = vector.broadcast %91 : vector<1x1x32xf32> to vector<1x16x32xf32>
    %168 = arith.mulf %166, %167 : vector<1x16x32xf32>
    %169 = vector.broadcast %94 : vector<1x1x32xf32> to vector<1x16x32xf32>
    %170 = arith.addf %168, %169 : vector<1x16x32xf32>
    %c2 = arith.constant 2 : index
    %c0_55 = arith.constant 0 : index
    %c0_56 = arith.constant 0 : index
    %171 = vector.load %arg6[%c2, %c0_55, %c0_56] : memref<4x32x32xbf16, #tpu.memory_space<vmem>>, vector<1x32x32xbf16>
    %172 = vector.shape_cast %171 : vector<1x32x32xbf16> to vector<32x32xbf16>
    %c2_57 = arith.constant 2 : index
    %c0_58 = arith.constant 0 : index
    %173 = vector.load %arg7[%c2_57, %c0_58] : memref<4x32xf32, #tpu.memory_space<vmem>>, vector<1x32xf32>
    %174 = vector.shape_cast %173 : vector<1x32xf32> to vector<32xf32>
    %175 = vector.shape_cast %170 : vector<1x16x32xf32> to vector<16x32xf32>
    %176 = arith.truncf %175 : vector<16x32xf32> to vector<16x32xbf16>
    %cst_59 = arith.constant dense<0.000000e+00> : vector<16x32xf32>
    %177 = tpu.matmul %176, %172, %cst_59 {dimension_numbers = #tpu.dot_dimension_numbers<[1], [0], [0], [1], [0, 0, 1, 1], [], []>} : vector<16x32xbf16>, vector<32x32xbf16>, vector<16x32xf32> -> vector<16x32xf32>
    %178 = vector.shape_cast %177 : vector<16x32xf32> to vector<1x16x32xf32>
    %179 = arith.truncf %178 : vector<1x16x32xf32> to vector<1x16x32xbf16>
    "tpu.trace_start"() <{level = 10 : i32, message = "bij,bjh->bih"}> : () -> ()
    %cst_60 = arith.constant dense<0.000000e+00> : vector<1x16x32xf32>
    %180 = tpu.matmul %76, %179, %cst_60 {dimension_numbers = #tpu.dot_dimension_numbers<[2], [1], [1], [2], [0, 0, 0, 1, 1, 2], [0], [0]>} : vector<1x16x16xbf16>, vector<1x16x32xbf16>, vector<1x16x32xf32> -> vector<1x16x32xf32>
    "tpu.trace_stop"() : () -> ()
    %181 = vector.shape_cast %174 : vector<32xf32> to vector<1x1x32xf32>
    %182 = vector.broadcast %181 : vector<1x1x32xf32> to vector<1x16x32xf32>
    %183 = arith.addf %180, %182 : vector<1x16x32xf32>
    %cst_61 = arith.constant 0.000000e+00 : f32
    %184 = vector.broadcast %cst_61 : f32 to vector<1x16x32xf32>
    %185 = arith.maximumf %183, %184 : vector<1x16x32xf32>
    %186 = arith.addf %185, %5 : vector<1x16x32xf32>
    %cst_62 = arith.constant dense<0.000000e+00> : vector<1x16xf32>
    %187 = vector.multi_reduction <add>, %186, %cst_62 [2] : vector<1x16x32xf32> to vector<1x16xf32>
    %188 = vector.shape_cast %187 : vector<1x16xf32> to vector<1x16x1xf32>
    %cst_63 = arith.constant 3.200000e+01 : f32
    %189 = vector.broadcast %cst_63 : f32 to vector<1x16x1xf32>
    %190 = arith.divf %188, %189 : vector<1x16x1xf32>
    %191 = vector.broadcast %190 : vector<1x16x1xf32> to vector<1x16x32xf32>
    %192 = arith.subf %186, %191 : vector<1x16x32xf32>
    %193 = arith.mulf %192, %192 : vector<1x16x32xf32>
    %cst_64 = arith.constant dense<0.000000e+00> : vector<1x16xf32>
    %194 = vector.multi_reduction <add>, %193, %cst_64 [2] : vector<1x16x32xf32> to vector<1x16xf32>
    %195 = vector.shape_cast %194 : vector<1x16xf32> to vector<1x16x1xf32>
    %cst_65 = arith.constant 3.200000e+01 : f32
    %196 = vector.broadcast %cst_65 : f32 to vector<1x16x1xf32>
    %197 = arith.divf %195, %196 : vector<1x16x1xf32>
    %198 = vector.broadcast %190 : vector<1x16x1xf32> to vector<1x16x32xf32>
    %199 = arith.subf %186, %198 : vector<1x16x32xf32>
    %cst_66 = arith.constant 9.99999974E-6 : f32
    %200 = vector.broadcast %cst_66 : f32 to vector<1x16x1xf32>
    %201 = arith.addf %197, %200 : vector<1x16x1xf32>
    %202 = math.rsqrt %201 : vector<1x16x1xf32>
    %203 = vector.broadcast %202 : vector<1x16x1xf32> to vector<1x16x32xf32>
    %204 = arith.mulf %199, %203 : vector<1x16x32xf32>
    %205 = vector.broadcast %91 : vector<1x1x32xf32> to vector<1x16x32xf32>
    %206 = arith.mulf %204, %205 : vector<1x16x32xf32>
    %207 = vector.broadcast %94 : vector<1x1x32xf32> to vector<1x16x32xf32>
    %208 = arith.addf %206, %207 : vector<1x16x32xf32>
    %c3 = arith.constant 3 : index
    %c0_67 = arith.constant 0 : index
    %c0_68 = arith.constant 0 : index
    %209 = vector.load %arg6[%c3, %c0_67, %c0_68] : memref<4x32x32xbf16, #tpu.memory_space<vmem>>, vector<1x32x32xbf16>
    %210 = vector.shape_cast %209 : vector<1x32x32xbf16> to vector<32x32xbf16>
    %c3_69 = arith.constant 3 : index
    %c0_70 = arith.constant 0 : index
    %211 = vector.load %arg7[%c3_69, %c0_70] : memref<4x32xf32, #tpu.memory_space<vmem>>, vector<1x32xf32>
    %212 = vector.shape_cast %211 : vector<1x32xf32> to vector<32xf32>
    %213 = vector.shape_cast %208 : vector<1x16x32xf32> to vector<16x32xf32>
    %214 = arith.truncf %213 : vector<16x32xf32> to vector<16x32xbf16>
    %cst_71 = arith.constant dense<0.000000e+00> : vector<16x32xf32>
    %215 = tpu.matmul %214, %210, %cst_71 {dimension_numbers = #tpu.dot_dimension_numbers<[1], [0], [0], [1], [0, 0, 1, 1], [], []>} : vector<16x32xbf16>, vector<32x32xbf16>, vector<16x32xf32> -> vector<16x32xf32>
    %216 = vector.shape_cast %215 : vector<16x32xf32> to vector<1x16x32xf32>
    %217 = arith.truncf %216 : vector<1x16x32xf32> to vector<1x16x32xbf16>
    "tpu.trace_start"() <{level = 10 : i32, message = "bij,bjh->bih"}> : () -> ()
    %cst_72 = arith.constant dense<0.000000e+00> : vector<1x16x32xf32>
    %218 = tpu.matmul %88, %217, %cst_72 {dimension_numbers = #tpu.dot_dimension_numbers<[2], [1], [1], [2], [0, 0, 0, 1, 1, 2], [0], [0]>} : vector<1x16x16xbf16>, vector<1x16x32xbf16>, vector<1x16x32xf32> -> vector<1x16x32xf32>
    "tpu.trace_stop"() : () -> ()
    %219 = vector.shape_cast %212 : vector<32xf32> to vector<1x1x32xf32>
    %220 = vector.broadcast %219 : vector<1x1x32xf32> to vector<1x16x32xf32>
    %221 = arith.addf %218, %220 : vector<1x16x32xf32>
    %cst_73 = arith.constant 0.000000e+00 : f32
    %222 = vector.broadcast %cst_73 : f32 to vector<1x16x32xf32>
    %223 = arith.maximumf %221, %222 : vector<1x16x32xf32>
    %224 = arith.addf %223, %5 : vector<1x16x32xf32>
    %cst_74 = arith.constant dense<0.000000e+00> : vector<1x16xf32>
    %225 = vector.multi_reduction <add>, %224, %cst_74 [2] : vector<1x16x32xf32> to vector<1x16xf32>
    %226 = vector.shape_cast %225 : vector<1x16xf32> to vector<1x16x1xf32>
    %cst_75 = arith.constant 3.200000e+01 : f32
    %227 = vector.broadcast %cst_75 : f32 to vector<1x16x1xf32>
    %228 = arith.divf %226, %227 : vector<1x16x1xf32>
    %229 = vector.broadcast %228 : vector<1x16x1xf32> to vector<1x16x32xf32>
    %230 = arith.subf %224, %229 : vector<1x16x32xf32>
    %231 = arith.mulf %230, %230 : vector<1x16x32xf32>
    %cst_76 = arith.constant dense<0.000000e+00> : vector<1x16xf32>
    %232 = vector.multi_reduction <add>, %231, %cst_76 [2] : vector<1x16x32xf32> to vector<1x16xf32>
    %233 = vector.shape_cast %232 : vector<1x16xf32> to vector<1x16x1xf32>
    %cst_77 = arith.constant 3.200000e+01 : f32
    %234 = vector.broadcast %cst_77 : f32 to vector<1x16x1xf32>
    %235 = arith.divf %233, %234 : vector<1x16x1xf32>
    %236 = vector.broadcast %228 : vector<1x16x1xf32> to vector<1x16x32xf32>
    %237 = arith.subf %224, %236 : vector<1x16x32xf32>
    %cst_78 = arith.constant 9.99999974E-6 : f32
    %238 = vector.broadcast %cst_78 : f32 to vector<1x16x1xf32>
    %239 = arith.addf %235, %238 : vector<1x16x1xf32>
    %240 = math.rsqrt %239 : vector<1x16x1xf32>
    %241 = vector.broadcast %240 : vector<1x16x1xf32> to vector<1x16x32xf32>
    %242 = arith.mulf %237, %241 : vector<1x16x32xf32>
    %243 = vector.broadcast %91 : vector<1x1x32xf32> to vector<1x16x32xf32>
    %244 = arith.mulf %242, %243 : vector<1x16x32xf32>
    %245 = vector.broadcast %94 : vector<1x1x32xf32> to vector<1x16x32xf32>
    %246 = arith.addf %244, %245 : vector<1x16x32xf32>
    %247 = vector.shape_cast %9 : vector<1x16xf32> to vector<1x16x1xf32>
    %248 = vector.broadcast %247 : vector<1x16x1xf32> to vector<1x16x32xf32>
    %249 = arith.mulf %246, %248 : vector<1x16x32xf32>
    %cst_79 = arith.constant dense<0.000000e+00> : vector<1xf32>
    %250 = vector.multi_reduction <add>, %9, %cst_79 [1] : vector<1x16xf32> to vector<1xf32>
    %251 = vector.shape_cast %250 : vector<1xf32> to vector<1x1xf32>
    %cst_80 = arith.constant 9.99999996E-13 : f32
    %252 = vector.broadcast %cst_80 : f32 to vector<1x1xf32>
    %253 = arith.maximumf %251, %252 : vector<1x1xf32>
    %cst_81 = arith.constant dense<0.000000e+00> : vector<1x32xf32>
    %254 = vector.multi_reduction <add>, %249, %cst_81 [1] : vector<1x16x32xf32> to vector<1x32xf32>
    %255 = vector.broadcast %253 : vector<1x1xf32> to vector<1x32xf32>
    %256 = arith.divf %254, %255 : vector<1x32xf32>
    %c0_82 = arith.constant 0 : index
    %c0_83 = arith.constant 0 : index
    %c0_84 = arith.constant 0 : index
    %257 = vector.load %arg9[%c0_82, %c0_83, %c0_84] : memref<1x1x32xf32, #tpu.memory_space<vmem>>, vector<1x1x32xf32>
    %258 = vector.shape_cast %257 : vector<1x1x32xf32> to vector<1x32xf32>
    %259 = vector.shape_cast %256 : vector<1x32xf32> to vector<1x1x32xf32>
    tpu.vector_store %arg9[%c0_82, %c0_83, %c0_84], %259 {strides = array<i32>} : memref<1x1x32xf32, #tpu.memory_space<vmem>>, vector<1x1x32xf32>,
    return
  }
  func.func @transform_0(%arg0: i32) -> (i32, i32, i32) {
    %c0_i32 = arith.constant 0 : i32
    %c0_i32_0 = arith.constant 0 : i32
    %c0_i32_1 = arith.constant 0 : i32
    return %arg0, %c0_i32, %c0_i32_0 : i32, i32, i32
  }
  func.func @transform_1(%arg0: i32) -> (i32, i32, i32) {
    %c0_i32 = arith.constant 0 : i32
    %c0_i32_0 = arith.constant 0 : i32
    %c0_i32_1 = arith.constant 0 : i32
    return %arg0, %c0_i32, %c0_i32_0 : i32, i32, i32
  }
  func.func @transform_2(%arg0: i32) -> (i32, i32, i32) {
    %c0_i32 = arith.constant 0 : i32
    %c0_i32_0 = arith.constant 0 : i32
    %c0_i32_1 = arith.constant 0 : i32
    return %arg0, %c0_i32, %c0_i32_0 : i32, i32, i32
  }
  func.func @transform_3(%arg0: i32) -> (i32, i32, i32) {
    %c0_i32 = arith.constant 0 : i32
    %c0_i32_0 = arith.constant 0 : i32
    %c0_i32_1 = arith.constant 0 : i32
    return %arg0, %c0_i32, %c0_i32_0 : i32, i32, i32
  }
  func.func @transform_4(%arg0: i32) -> (i32, i32, i32) {
    %c0_i32 = arith.constant 0 : i32
    %c0_i32_0 = arith.constant 0 : i32
    %c0_i32_1 = arith.constant 0 : i32
    return %arg0, %c0_i32, %c0_i32_0 : i32, i32, i32
  }
  func.func @transform_5(%arg0: i32) -> (i32, i32, i32) {
    %c0_i32 = arith.constant 0 : i32
    %c0_i32_0 = arith.constant 0 : i32
    %c0_i32_1 = arith.constant 0 : i32
    %c0_i32_2 = arith.constant 0 : i32
    return %c0_i32, %c0_i32_0, %c0_i32_1 : i32, i32, i32
  }
  func.func @transform_6(%arg0: i32) -> (i32, i32) {
    %c0_i32 = arith.constant 0 : i32
    %c0_i32_0 = arith.constant 0 : i32
    %c0_i32_1 = arith.constant 0 : i32
    return %c0_i32, %c0_i32_0 : i32, i32
  }
  func.func @transform_7(%arg0: i32) -> (i32, i32) {
    %c0_i32 = arith.constant 0 : i32
    %c0_i32_0 = arith.constant 0 : i32
    %c0_i32_1 = arith.constant 0 : i32
    return %c0_i32, %c0_i32_0 : i32, i32
  }
  func.func @transform_8(%arg0: i32) -> (i32, i32, i32) {
    %c0_i32 = arith.constant 0 : i32
    %c0_i32_0 = arith.constant 0 : i32
    %c0_i32_1 = arith.constant 0 : i32
    return %arg0, %c0_i32, %c0_i32_0 : i32, i32, i32
  }
}

</mosaic_0001>

<llo_original>
// kernel: absa_forward.1
$region0: #{absa_forward.1}
  #allocation0 [shape = 'u32[]', space=smem, size = 0x4, offset = 0x4, fixed_abs, tag = 'smem constant byte address 0x4 - core index']
  #allocation1 [shape = 'u32[72,128]{1,0:T(1,128)}', space=vmem, size = 0x9000, scoped, tag = 'internal scratch']
  %s0 = inlined_call_operand.vmem [shape: bf16[2,16,16], index: 0, kind: input, shape index: {}]
  %s1 = inlined_call_operand.vmem [shape: bf16[2,16,16], index: 1, kind: input, shape index: {}]
  %s2 = inlined_call_operand.vmem [shape: bf16[2,16,32], index: 2, kind: input, shape index: {}]
  %s3 = inlined_call_operand.vmem [shape: f32[2,1,16], index: 3, kind: input, shape index: {}]
  %s4 = inlined_call_operand.vmem [shape: f32[2,1,16], index: 4, kind: input, shape index: {}]
  %s5 = inlined_call_operand.vmem [shape: bf16[4,32,32], index: 5, kind: input, shape index: {}]
  %s6 = inlined_call_operand.vmem [shape: f32[4,32], index: 6, kind: input, shape index: {}]
  %s7 = inlined_call_operand.vmem [shape: f32[2,32], index: 7, kind: input, shape index: {}]
  %s8 = inlined_call_operand.vmem [shape: f32[2,1,32], index: 8, kind: output, shape index: {}]
  %s9 = sld [smem:[#allocation0]]
  $region65: #{absa_forward.1} parent=0
    _
  %s11 = ssub.s32 1, %s9
  %s12 = scalar_select 0, %s11, %s9
  loop: start=0, step=1, limit=4
  $region2: #{absa_forward.1} parent=0 // loop_pre_header
    _
  $region3: #{absa_forward.1} parent=0 // loop_header
    %s14 = sphi 0, %s18
    %p15 = scmp.ge.s32.totalorder %s14, 4
    %s24 = sphi 0, %s26
    %s27 = sphi 0, %s24
    %s28 = sphi 0, %s27
    %s44 = sphi 0, %s28
    %s50 = sphi 0, %s52
    %s53 = sphi 0, %s50
    %s54 = sphi 0, %s53
    %s70 = sphi 0, %s54
    %s76 = sphi 0, %s78
    %s79 = sphi 0, %s76
    %s80 = sphi 0, %s79
    %s96 = sphi 0, %s80
    %s102 = sphi 0, %s104
    %s105 = sphi 0, %s102
    %s106 = sphi 0, %s105
    %s122 = sphi 0, %s106
    %s128 = sphi 0, %s130
    %s131 = sphi 0, %s128
    %s132 = sphi 0, %s131
    %s148 = sphi 0, %s132
    %s152 = sphi 0, %s152
    %s154 = sphi 0, %s152
    %s155 = sphi 0, %s154
    %s169 = sphi 0, %s155
    %s173 = sphi 0, %s173
    %s175 = sphi 0, %s173
    %s176 = sphi 0, %s175
    %s190 = sphi 0, %s176
    %s194 = sphi 0, %s194
    %s196 = sphi 0, %s194
    %s197 = sphi 0, %s196
    %s211 = sphi 0, %s197
    %s217 = sphi 0, %s219
    %s220 = sphi 0, %s217
    %s221 = sphi 0, %s220
    %s237 = sphi 0, %s221
  $region4: #{absa_forward.1} parent=0 // loop_header_branch
    %17 = sbr.rel (%p15) target = $region8
  $region5: #{absa_forward.1} parent=0 // loop_body
    %s19 = ssub.s32 %s14, 1
    %s20 = ssub.s32 %s14, 2
    %s21 = sadd.s32 %s14, 1
    %s22 = ssub.s32 %s14, %s21
    %p23 = scmp.eq.s32.totalorder %s22, 0
    %s25 = sadd.s32 %s24, 1
    %s26 = scalar_select %p23, %s24, %s25
    %p29 = pneg %p23
    %p30 = scmp.eq.s32.totalorder %s14, 1
    %p31 = por %p29, %p30
    %p32 = scmp.ne.s32.totalorder %s24, %s27
    %p33 = scmp.eq.s32.totalorder %s14, 0
    %p34 = por %p32, %p33
    %p35 = scmp.ne.s32.totalorder %s24, %s27
    %p36 = scmp.eq.s32.totalorder %s19, 1
    %p37 = por %p35, %p36
    %p38 = scmp.ne.s32.totalorder %s27, %s28
    %p39 = scmp.eq.s32.totalorder %s19, 0
    %p40 = por %p38, %p39
    %p41 = scmp.ne.s32.totalorder %s27, %s28
    %p42 = scmp.eq.s32.totalorder %s20, 1
    %p43 = por %p41, %p42
    %p45 = scmp.ne.s32.totalorder %s28, %s44
    %p46 = scmp.eq.s32.totalorder %s20, 0
    %p47 = por %p45, %p46
    %s48 = ssub.s32 %s14, %s21
    %p49 = scmp.eq.s32.totalorder %s48, 0
    %s51 = sadd.s32 %s50, 1
    %s52 = scalar_select %p49, %s50, %s51
    %p55 = pneg %p49
    %p56 = scmp.eq.s32.totalorder %s14, 1
    %p57 = por %p55, %p56
    %p58 = scmp.ne.s32.totalorder %s50, %s53
    %p59 = scmp.eq.s32.totalorder %s14, 0
    %p60 = por %p58, %p59
    %p61 = scmp.ne.s32.totalorder %s50, %s53
    %p62 = scmp.eq.s32.totalorder %s19, 1
    %p63 = por %p61, %p62
    %p64 = scmp.ne.s32.totalorder %s53, %s54
    %p65 = scmp.eq.s32.totalorder %s19, 0
    %p66 = por %p64, %p65
    %p67 = scmp.ne.s32.totalorder %s53, %s54
    %p68 = scmp.eq.s32.totalorder %s20, 1
    %p69 = por %p67, %p68
    %p71 = scmp.ne.s32.totalorder %s54, %s70
    %p72 = scmp.eq.s32.totalorder %s20, 0
    %p73 = por %p71, %p72
    %s74 = ssub.s32 %s14, %s21
    %p75 = scmp.eq.s32.totalorder %s74, 0
    %s77 = sadd.s32 %s76, 1
    %s78 = scalar_select %p75, %s76, %s77
    %p81 = pneg %p75
    %p82 = scmp.eq.s32.totalorder %s14, 1
    %p83 = por %p81, %p82
    %p84 = scmp.ne.s32.totalorder %s76, %s79
    %p85 = scmp.eq.s32.totalorder %s14, 0
    %p86 = por %p84, %p85
    %p87 = scmp.ne.s32.totalorder %s76, %s79
    %p88 = scmp.eq.s32.totalorder %s19, 1
    %p89 = por %p87, %p88
    %p90 = scmp.ne.s32.totalorder %s79, %s80
    %p91 = scmp.eq.s32.totalorder %s19, 0
    %p92 = por %p90, %p91
    %p93 = scmp.ne.s32.totalorder %s79, %s80
    %p94 = scmp.eq.s32.totalorder %s20, 1
    %p95 = por %p93, %p94
    %p97 = scmp.ne.s32.totalorder %s80, %s96
    %p98 = scmp.eq.s32.totalorder %s20, 0
    %p99 = por %p97, %p98
    %s100 = ssub.s32 %s14, %s21
    %p101 = scmp.eq.s32.totalorder %s100, 0
    %s103 = sadd.s32 %s102, 1
    %s104 = scalar_select %p101, %s102, %s103
    %p107 = pneg %p101
    %p108 = scmp.eq.s32.totalorder %s14, 1
    %p109 = por %p107, %p108
    %p110 = scmp.ne.s32.totalorder %s102, %s105
    %p111 = scmp.eq.s32.totalorder %s14, 0
    %p112 = por %p110, %p111
    %p113 = scmp.ne.s32.totalorder %s102, %s105
    %p114 = scmp.eq.s32.totalorder %s19, 1
    %p115 = por %p113, %p114
    %p116 = scmp.ne.s32.totalorder %s105, %s106
    %p117 = scmp.eq.s32.totalorder %s19, 0
    %p118 = por %p116, %p117
    %p119 = scmp.ne.s32.totalorder %s105, %s106
    %p120 = scmp.eq.s32.totalorder %s20, 1
    %p121 = por %p119, %p120
    %p123 = scmp.ne.s32.totalorder %s106, %s122
    %p124 = scmp.eq.s32.totalorder %s20, 0
    %p125 = por %p123, %p124
    %s126 = ssub.s32 %s14, %s21
    %p127 = scmp.eq.s32.totalorder %s126, 0
    %s129 = sadd.s32 %s128, 1
    %s130 = scalar_select %p127, %s128, %s129
    %p133 = pneg %p127
    %p134 = scmp.eq.s32.totalorder %s14, 1
    %p135 = por %p133, %p134
    %p136 = scmp.ne.s32.totalorder %s128, %s131
    %p137 = scmp.eq.s32.totalorder %s14, 0
    %p138 = por %p136, %p137
    %p139 = scmp.ne.s32.totalorder %s128, %s131
    %p140 = scmp.eq.s32.totalorder %s19, 1
    %p141 = por %p139, %p140
    %p142 = scmp.ne.s32.totalorder %s131, %s132
    %p143 = scmp.eq.s32.totalorder %s19, 0
    %p144 = por %p142, %p143
    %p145 = scmp.ne.s32.totalorder %s131, %s132
    %p146 = scmp.eq.s32.totalorder %s20, 1
    %p147 = por %p145, %p146
    %p149 = scmp.ne.s32.totalorder %s132, %s148
    %p150 = scmp.eq.s32.totalorder %s20, 0
    %p151 = por %p149, %p150
    %s153 = sadd.s32 %s152, 1
    %p156 = scmp.eq.s32.totalorder %s14, 1
    %p157 = scmp.ne.s32.totalorder %s152, %s154
    %p158 = scmp.eq.s32.totalorder %s14, 0
    %p159 = por %p157, %p158
    %p160 = scmp.ne.s32.totalorder %s152, %s154
    %p161 = scmp.eq.s32.totalorder %s19, 1
    %p162 = por %p160, %p161
    %p163 = scmp.ne.s32.totalorder %s154, %s155
    %p164 = scmp.eq.s32.totalorder %s19, 0
    %p165 = por %p163, %p164
    %p166 = scmp.ne.s32.totalorder %s154, %s155
    %p167 = scmp.eq.s32.totalorder %s20, 1
    %p168 = por %p166, %p167
    %p170 = scmp.ne.s32.totalorder %s155, %s169
    %p171 = scmp.eq.s32.totalorder %s20, 0
    %p172 = por %p170, %p171
    %s174 = sadd.s32 %s173, 1
    %p177 = scmp.eq.s32.totalorder %s14, 1
    %p178 = scmp.ne.s32.totalorder %s173, %s175
    %p179 = scmp.eq.s32.totalorder %s14, 0
    %p180 = por %p178, %p179
    %p181 = scmp.ne.s32.totalorder %s173, %s175
    %p182 = scmp.eq.s32.totalorder %s19, 1
    %p183 = por %p181, %p182
    %p184 = scmp.ne.s32.totalorder %s175, %s176
    %p185 = scmp.eq.s32.totalorder %s19, 0
    %p186 = por %p184, %p185
    %p187 = scmp.ne.s32.totalorder %s175, %s176
    %p188 = scmp.eq.s32.totalorder %s20, 1
    %p189 = por %p187, %p188
    %p191 = scmp.ne.s32.totalorder %s176, %s190
    %p192 = scmp.eq.s32.totalorder %s20, 0
    %p193 = por %p191, %p192
    %s195 = sadd.s32 %s194, 1
    %p198 = scmp.eq.s32.totalorder %s14, 1
    %p199 = scmp.ne.s32.totalorder %s194, %s196
    %p200 = scmp.eq.s32.totalorder %s14, 0
    %p201 = por %p199, %p200
    %p202 = scmp.ne.s32.totalorder %s194, %s196
    %p203 = scmp.eq.s32.totalorder %s19, 1
    %p204 = por %p202, %p203
    %p205 = scmp.ne.s32.totalorder %s196, %s197
    %p206 = scmp.eq.s32.totalorder %s19, 0
    %p207 = por %p205, %p206
    %p208 = scmp.ne.s32.totalorder %s196, %s197
    %p209 = scmp.eq.s32.totalorder %s20, 1
    %p210 = por %p208, %p209
    %p212 = scmp.ne.s32.totalorder %s197, %s211
    %p213 = scmp.eq.s32.totalorder %s20, 0
    %p214 = por %p212, %p213
    %s215 = ssub.s32 %s14, %s21
    %p216 = scmp.eq.s32.totalorder %s215, 0
    %s218 = sadd.s32 %s217, 1
    %s219 = scalar_select %p216, %s217, %s218
    %p222 = pneg %p216
    %p223 = scmp.eq.s32.totalorder %s14, 1
    %p224 = por %p222, %p223
    %p225 = scmp.ne.s32.totalorder %s217, %s220
    %p226 = scmp.eq.s32.totalorder %s14, 0
    %p227 = por %p225, %p226
    %p228 = scmp.ne.s32.totalorder %s217, %s220
    %p229 = scmp.eq.s32.totalorder %s19, 1
    %p230 = por %p228, %p229
    %p231 = scmp.ne.s32.totalorder %s220, %s221
    %p232 = scmp.eq.s32.totalorder %s19, 0
    %p233 = por %p231, %p232
    %p234 = scmp.ne.s32.totalorder %s220, %s221
    %p235 = scmp.eq.s32.totalorder %s20, 1
    %p236 = por %p234, %p235
    %p238 = scmp.ne.s32.totalorder %s221, %s237
    %p239 = scmp.eq.s32.totalorder %s20, 0
    %p240 = por %p238, %p239
    %p241 = scmp.le.s32.totalorder 1, %s14
    %p242 = scmp.lt.s32.totalorder %s14, 3
    %p243 = pnand %p241, %p242
    %p244 = pneg %p243
    // Predicated region
    $region9: #{absa_forward.1} parent=5 // pred_check
      _
    $region10: #{absa_forward.1} parent=5 // pred_check_branch
      %246 = sbr.rel (%p243) target = $region12
    $region11: #{absa_forward.1} parent=5 // pred_region
      %s247 = ssub.s32 %s14, 1
      // Predicated region
      $region13: #{absa_forward.1} parent=11 // pred_check
        %p248 = pneg %p165
      $region14: #{absa_forward.1} parent=11 // pred_check_branch
        %250 = sbr.rel (%p248) target = $region16
      $region15: #{absa_forward.1} parent=11 // pred_region
        _
      $region16: #{absa_forward.1} parent=11 // pred_fallthru
        _
      // Predicated region
      $region17: #{absa_forward.1} parent=11 // pred_check
        %p251 = pneg %p186
      $region18: #{absa_forward.1} parent=11 // pred_check_branch
        %253 = sbr.rel (%p251) target = $region20
      $region19: #{absa_forward.1} parent=11 // pred_region
        _
      $region20: #{absa_forward.1} parent=11 // pred_fallthru
        _
      // Predicated region
      $region21: #{absa_forward.1} parent=11 // pred_check
        %p254 = pneg %p207
      $region22: #{absa_forward.1} parent=11 // pred_check_branch
        %256 = sbr.rel (%p254) target = $region24
      $region23: #{absa_forward.1} parent=11 // pred_region
        _
      $region24: #{absa_forward.1} parent=11 // pred_fallthru
        _
    $region12: #{absa_forward.1} parent=5 // pred_fallthru
      _
    %p257 = scmp.lt.s32.totalorder %s14, 2
    // Predicated region
    $region25: #{absa_forward.1} parent=5 // pred_check
      %p258 = pneg %p257
    $region26: #{absa_forward.1} parent=5 // pred_check_branch
      %260 = sbr.rel (%p258) target = $region28
    $region27: #{absa_forward.1} parent=5 // pred_region
      // Predicated region
      $region29: #{absa_forward.1} parent=27 // pred_check
        %p261 = pneg %p34
      $region30: #{absa_forward.1} parent=27 // pred_check_branch
        %263 = sbr.rel (%p261) target = $region32
      $region31: #{absa_forward.1} parent=27 // pred_region
        %p264 = scmp.lt.s32.totalorder %s14, 1
        %s265 = scalar_select %p264, %s14, 1
        %s266 = smul.addr %s265, 2
        %s267 = smul.addr %s266, 4
        %s268 = scalar_lea.vmem %s0, %s267
      $region32: #{absa_forward.1} parent=27 // pred_fallthru
        _
      // Predicated region
      $region33: #{absa_forward.1} parent=27 // pred_check
        %p269 = pneg %p60
      $region34: #{absa_forward.1} parent=27 // pred_check_branch
        %271 = sbr.rel (%p269) target = $region36
      $region35: #{absa_forward.1} parent=27 // pred_region
        %p272 = scmp.lt.s32.totalorder %s14, 1
        %s273 = scalar_select %p272, %s14, 1
        %s274 = smul.addr %s273, 2
        %s275 = smul.addr %s274, 4
        %s276 = scalar_lea.vmem %s1, %s275
      $region36: #{absa_forward.1} parent=27 // pred_fallthru
        _
      // Predicated region
      $region37: #{absa_forward.1} parent=27 // pred_check
        %p277 = pneg %p86
      $region38: #{absa_forward.1} parent=27 // pred_check_branch
        %279 = sbr.rel (%p277) target = $region40
      $region39: #{absa_forward.1} parent=27 // pred_region
        %p280 = scmp.lt.s32.totalorder %s14, 1
        %s281 = scalar_select %p280, %s14, 1
        %s282 = smul.addr %s281, 2
        %s283 = smul.addr %s282, 4
        %s284 = scalar_lea.vmem %s2, %s283
      $region40: #{absa_forward.1} parent=27 // pred_fallthru
        _
      // Predicated region
      $region41: #{absa_forward.1} parent=27 // pred_check
        %p285 = pneg %p112
      $region42: #{absa_forward.1} parent=27 // pred_check_branch
        %287 = sbr.rel (%p285) target = $region44
      $region43: #{absa_forward.1} parent=27 // pred_region
        %p288 = scmp.lt.s32.totalorder %s14, 1
        %s289 = scalar_select %p288, %s14, 1
        %s290 = scalar_lea.vmem %s3, %s289
      $region44: #{absa_forward.1} parent=27 // pred_fallthru
        _
      // Predicated region
      $region45: #{absa_forward.1} parent=27 // pred_check
        %p291 = pneg %p138
      $region46: #{absa_forward.1} parent=27 // pred_check_branch
        %293 = sbr.rel (%p291) target = $region48
      $region47: #{absa_forward.1} parent=27 // pred_region
        %p294 = scmp.lt.s32.totalorder %s14, 1
        %s295 = scalar_select %p294, %s14, 1
        %s296 = scalar_lea.vmem %s4, %s295
      $region48: #{absa_forward.1} parent=27 // pred_fallthru
        _
    $region28: #{absa_forward.1} parent=5 // pred_fallthru
      _
    %p297 = scmp.le.s32.totalorder 1, %s14
    %p298 = scmp.lt.s32.totalorder %s14, 3
    %p299 = pnand %p297, %p298
    %p300 = pneg %p299
    // Predicated region
    $region49: #{absa_forward.1} parent=5 // pred_check
      _
    $region50: #{absa_forward.1} parent=5 // pred_check_branch
      %302 = sbr.rel (%p299) target = $region52
    $region51: #{absa_forward.1} parent=5 // pred_region
      %s303 = ssub.s32 %s14, 1
      %p304 = scmp.lt.s32.totalorder %s19, 1
      %s305 = scalar_select %p304, %s19, 1
      %s306 = smul.addr %s305, 2
      %s307 = smul.addr %s306, 4
      %s308 = scalar_lea.vmem %s0, %s307
      %p309 = pneg %p40
      %p310 = pneg %p37
      %p311 = scmp.lt.s32.totalorder %s19, 1
      %s312 = scalar_select %p311, %s19, 1
      %s313 = smul.addr %s312, 2
      %s314 = smul.addr %s313, 4
      %s315 = scalar_lea.vmem %s1, %s314
      %p316 = pneg %p66
      %p317 = pneg %p63
      %p318 = scmp.lt.s32.totalorder %s19, 1
      %s319 = scalar_select %p318, %s19, 1
      %s320 = smul.addr %s319, 2
      %s321 = smul.addr %s320, 4
      %s322 = scalar_lea.vmem %s2, %s321
      %p323 = pneg %p92
      %p324 = pneg %p89
      %p325 = scmp.lt.s32.totalorder %s19, 1
      %s326 = scalar_select %p325, %s19, 1
      %s327 = scalar_lea.vmem %s3, %s326
      %p328 = pneg %p118
      %p329 = pneg %p115
      %p330 = scmp.lt.s32.totalorder %s19, 1
      %s331 = scalar_select %p330, %s19, 1
      %s332 = scalar_lea.vmem %s4, %s331
      %p333 = pneg %p144
      %p334 = pneg %p141
      %p335 = pneg %p165
      %p336 = pneg %p162
      %p337 = pneg %p186
      %p338 = pneg %p183
      %p339 = pneg %p207
      %p340 = pneg %p204
      %p341 = pneg %p233
      %p342 = pneg %p230
      %p343 = scmp.lt.s32.totalorder %s19, 1
      %s344 = scalar_select %p343, %s19, 1
      %s345 = scalar_lea.vmem %s8, %s344
      %p346 = scmp.lt.s32.totalorder %s19, 1
      %s347 = scalar_select %p346, %s19, 1
      %s348 = smul.addr %s347, 2
      %s349 = smul.addr %s348, 4
      %s350 = scalar_lea.vmem %s0, %s349
      %p351 = scmp.lt.s32.totalorder %s19, 1
      %s352 = scalar_select %p351, %s19, 1
      %s353 = smul.addr %s352, 2
      %s354 = smul.addr %s353, 4
      %s355 = scalar_lea.vmem %s1, %s354
      %p356 = scmp.lt.s32.totalorder %s19, 1
      %s357 = scalar_select %p356, %s19, 1
      %s358 = smul.addr %s357, 2
      %s359 = smul.addr %s358, 4
      %s360 = scalar_lea.vmem %s2, %s359
      %p361 = scmp.lt.s32.totalorder %s19, 1
      %s362 = scalar_select %p361, %s19, 1
      %s363 = scalar_lea.vmem %s3, %s362
      %p364 = scmp.lt.s32.totalorder %s19, 1
      %s365 = scalar_select %p364, %s19, 1
      %s366 = scalar_lea.vmem %s4, %s365
      %p367 = scmp.lt.s32.totalorder %s19, 1
      %s368 = scalar_select %p367, %s19, 1
      %s369 = scalar_lea.vmem %s8, %s368
      %v371 = vld [vmem:[%s350] sm:$0xf]
      %v372 = vld [vmem:[%s350 + $0x4] sm:$0xf]
      %v373 = vunpack.c.l.bf16 %v371
      %v374 = vunpack.c.l.bf16 %v372
      %v375 = vld [vmem:[%s355] sm:$0xf]
      %v376 = vld [vmem:[%s355 + $0x4] sm:$0xf]
      %v377 = vunpack.c.l.bf16 %v375
      %v378 = vunpack.c.l.bf16 %v376
      %v379 = vld [vmem:[%s360] sm:$0xf]
      %v380 = vld [vmem:[%s360 + $0x4] sm:$0xf]
      %v381 = vunpack.c.l.bf16 %v379
      %v382 = vunpack.c.l.bf16 %v380
      %v383 = vld [vmem:[%s363] sm:$0x1]
      %v384 = vld [vmem:[%s366] sm:$0x1]
      %v385 = vlaneseq
      %v386 = vshrl.u32 %v385, 7
      %v387 = vadd.s32 %v386, 8
      %v388 = vlaneseq
      %v389 = vand.u32 %v388, 127
      %vm390 = vcmp.eq.s32.totalorder %v386, %v389
      %vm391 = vcmp.eq.s32.totalorder %v387, %v389
      %v392 = vsel %vm390, 1, 0
      %v393 = vsel %vm391, 1, 0
      %v394 = vcvt.s32.f32 %v392
      %v395 = vcvt.s32.f32 %v393
      %v396 = vmul.f32 %v394, 1e-12
      %v397 = vmul.f32 %v395, 1e-12
      %v398 = vperm.slane %v383, 0
      %v399 = vlaneseq
      %v400 = vshrl.u32 %v399, 7
      %402 = vset.pattern.permute.xlu0 %v400
      %403 = vperm.xlu0 %402, %v398
      %v404 = vpop.permute.xlu0 %403
      %v405 = vlaneseq
      %v406 = vshrl.u32 %v405, 7
      %v407 = vadd.s32 %v406, 8
      %408 = vset.pattern.permute.xlu0 %v407
      %409 = vperm.xlu0 %408, %v398
      %v410 = vpop.permute.xlu0 %409
      %v412 = vperm.slane %v383, 0
      %v414 = vmul.f32 %v404, %v412
      %v415 = vmul.f32 %v410, %v412
      %v416 = vmul.f32 %v373, %v414
      %v417 = vmul.f32 %v374, %v415
      %v418 = vadd.f32 %v416, %v396
      %v419 = vadd.f32 %v417, %v397
      %vm420 = vcmask 130048
      %v421 = vsel %vm420, %v418, 0.0
      %422 = vadd.xlane.f32.xlu0 %v421
      %v423 = vpop.xlane.xlu0 %422
      %v424 = vsel %vm420, %v419, 0.0
      %425 = vadd.xlane.f32.xlu0 %v424
      %v426 = vpop.xlane.xlu0 %425
      %v427 = vrcp.pop %v423
      %v428 = vmul.f32 %v423, %v427
      %v429 = vsub.f32 1.0, %v428
      %v430 = vmul.f32 %v427, %v429
      %v431 = vadd.f32 %v427, %v430
      %vm432 = vweird.f32 %v423
      %vm433 = vweird.f32 %v427
      %vm434 = vmor %vm432, %vm433
      %v435 = vsel %vm434, %v427, %v431
      %v436 = vand.u32 2147483647, %v423
      %vm437 = vcmp.eq.f32.partialorder %v436, 8.507059e+37
      %v438 = vand.u32 %v423, 2147483648
      %v439 = vor.u32 1.1754944e-38, %v438
      %v440 = vsel %vm437, %v439, %v435
      %v441 = vmul.f32 1.0, %v440
      %v442 = vrcp.pop %v426
      %v443 = vmul.f32 %v426, %v442
      %v444 = vsub.f32 1.0, %v443
      %v445 = vmul.f32 %v442, %v444
      %v446 = vadd.f32 %v442, %v445
      %vm447 = vweird.f32 %v426
      %vm448 = vweird.f32 %v442
      %vm449 = vmor %vm447, %vm448
      %v450 = vsel %vm449, %v442, %v446
      %v451 = vand.u32 2147483647, %v426
      %vm452 = vcmp.eq.f32.partialorder %v451, 8.507059e+37
      %v453 = vand.u32 %v426, 2147483648
      %v454 = vor.u32 1.1754944e-38, %v453
      %v455 = vsel %vm452, %v454, %v450
      %v456 = vmul.f32 1.0, %v455
      %v457 = vmul.f32 %v418, %v441
      %v458 = vmul.f32 %v419, %v456
      %v459 = vmul.f32 %v457, %v414
      %v460 = vmul.f32 %v458, %v415
      %v461 = vadd.f32 %v459, %v396
      %v462 = vadd.f32 %v460, %v397
      %v463 = vmul.f32 %v377, %v414
      %v464 = vmul.f32 %v378, %v415
      %v465 = vadd.f32 %v463, %v396
      %v466 = vadd.f32 %v464, %v397
      %v467 = vsel %vm420, %v465, 0.0
      %468 = vadd.xlane.f32.xlu0 %v467
      %v469 = vpop.xlane.xlu0 %468
      %v470 = vsel %vm420, %v466, 0.0
      %471 = vadd.xlane.f32.xlu0 %v470
      %v472 = vpop.xlane.xlu0 %471
      %v473 = vrcp.pop %v469
      %v474 = vmul.f32 %v469, %v473
      %v475 = vsub.f32 1.0, %v474
      %v476 = vmul.f32 %v473, %v475
      %v477 = vadd.f32 %v473, %v476
      %vm478 = vweird.f32 %v469
      %vm479 = vweird.f32 %v473
      %vm480 = vmor %vm478, %vm479
      %v481 = vsel %vm480, %v473, %v477
      %v482 = vand.u32 2147483647, %v469
      %vm483 = vcmp.eq.f32.partialorder %v482, 8.507059e+37
      %v484 = vand.u32 %v469, 2147483648
      %v485 = vor.u32 1.1754944e-38, %v484
      %v486 = vsel %vm483, %v485, %v481
      %v487 = vmul.f32 1.0, %v486
      %v488 = vrcp.pop %v472
      %v489 = vmul.f32 %v472, %v488
      %v490 = vsub.f32 1.0, %v489
      %v491 = vmul.f32 %v488, %v490
      %v492 = vadd.f32 %v488, %v491
      %vm493 = vweird.f32 %v472
      %vm494 = vweird.f32 %v488
      %vm495 = vmor %vm493, %vm494
      %v496 = vsel %vm495, %v488, %v492
      %v497 = vand.u32 2147483647, %v472
      %vm498 = vcmp.eq.f32.partialorder %v497, 8.507059e+37
      %v499 = vand.u32 %v472, 2147483648
      %v500 = vor.u32 1.1754944e-38, %v499
      %v501 = vsel %vm498, %v500, %v496
      %v502 = vmul.f32 1.0, %v501
      %v503 = vmul.f32 %v465, %v487
      %v504 = vmul.f32 %v466, %v502
      %v505 = vmul.f32 %v503, %v414
      %v506 = vmul.f32 %v504, %v415
      %v507 = vadd.f32 %v505, %v396
      %v508 = vadd.f32 %v506, %v397
      %509 = vxpose.xlu0.b32.start [1/16] %v373, 128
      %510 = vxpose.xlu0.b32.cont [2/16] %v374, 128
      %511 = vxpose.xlu0.b32.cont [3/16] 0.0, 128
      %512 = vxpose.xlu0.b32.cont [4/16] 0.0, 128
      %513 = vxpose.xlu0.b32.cont [5/16] 0.0, 128
      %514 = vxpose.xlu0.b32.cont [6/16] 0.0, 128
      %515 = vxpose.xlu0.b32.cont [7/16] 0.0, 128
      %516 = vxpose.xlu0.b32.cont [8/16] 0.0, 128
      %517 = vxpose.xlu0.b32.cont [9/16] 0.0, 128
      %518 = vxpose.xlu0.b32.cont [10/16] 0.0, 128
      %519 = vxpose.xlu0.b32.cont [11/16] 0.0, 128
      %520 = vxpose.xlu0.b32.cont [12/16] 0.0, 128
      %521 = vxpose.xlu0.b32.cont [13/16] 0.0, 128
      %522 = vxpose.xlu0.b32.cont [14/16] 0.0, 128
      %523 = vxpose.xlu0.b32.cont [15/16] 0.0, 128
      %524 = vxpose.xlu0.b32.end [16/16] 0.0, 128
      %v525 = vpop.trf.xlu0
      %v526 = vpop.trf.xlu0
      %v527 = vpop.trf.xlu0
      %v528 = vpop.trf.xlu0
      %v529 = vpop.trf.xlu0
      %v530 = vpop.trf.xlu0
      %v531 = vpop.trf.xlu0
      %v532 = vpop.trf.xlu0
      %v533 = vpop.trf.xlu0
      %v534 = vpop.trf.xlu0
      %v535 = vpop.trf.xlu0
      %v536 = vpop.trf.xlu0
      %v537 = vpop.trf.xlu0
      %v538 = vpop.trf.xlu0
      %v539 = vpop.trf.xlu0
      %v540 = vpop.trf.xlu0
      %v541 = vmul.f32 %v525, %v414
      %v542 = vmul.f32 %v526, %v415
      %v543 = vadd.f32 %v541, %v396
      %v544 = vadd.f32 %v542, %v397
      %v545 = vsel %vm420, %v543, 0.0
      %546 = vadd.xlane.f32.xlu0 %v545
      %v547 = vpop.xlane.xlu0 %546
      %v548 = vsel %vm420, %v544, 0.0
      %549 = vadd.xlane.f32.xlu0 %v548
      %v550 = vpop.xlane.xlu0 %549
      %v551 = vrcp.pop %v547
      %v552 = vmul.f32 %v547, %v551
      %v553 = vsub.f32 1.0, %v552
      %v554 = vmul.f32 %v551, %v553
      %v555 = vadd.f32 %v551, %v554
      %vm556 = vweird.f32 %v547
      %vm557 = vweird.f32 %v551
      %vm558 = vmor %vm556, %vm557
      %v559 = vsel %vm558, %v551, %v555
      %v560 = vand.u32 2147483647, %v547
      %vm561 = vcmp.eq.f32.partialorder %v560, 8.507059e+37
      %v562 = vand.u32 %v547, 2147483648
      %v563 = vor.u32 1.1754944e-38, %v562
      %v564 = vsel %vm561, %v563, %v559
      %v565 = vmul.f32 1.0, %v564
      %v566 = vrcp.pop %v550
      %v567 = vmul.f32 %v550, %v566
      %v568 = vsub.f32 1.0, %v567
      %v569 = vmul.f32 %v566, %v568
      %v570 = vadd.f32 %v566, %v569
      %vm571 = vweird.f32 %v550
      %vm572 = vweird.f32 %v566
      %vm573 = vmor %vm571, %vm572
      %v574 = vsel %vm573, %v566, %v570
      %v575 = vand.u32 2147483647, %v550
      %vm576 = vcmp.eq.f32.partialorder %v575, 8.507059e+37
      %v577 = vand.u32 %v550, 2147483648
      %v578 = vor.u32 1.1754944e-38, %v577
      %v579 = vsel %vm576, %v578, %v574
      %v580 = vmul.f32 1.0, %v579
      %v581 = vmul.f32 %v543, %v565
      %v582 = vmul.f32 %v544, %v580
      %v583 = vmul.f32 %v581, %v414
      %v584 = vmul.f32 %v582, %v415
      %v585 = vadd.f32 %v583, %v396
      %v586 = vadd.f32 %v584, %v397
      %587 = vxpose.xlu0.b32.start [1/16] %v377, 128
      %588 = vxpose.xlu0.b32.cont [2/16] %v378, 128
      %589 = vxpose.xlu0.b32.cont [3/16] 0.0, 128
      %590 = vxpose.xlu0.b32.cont [4/16] 0.0, 128
      %591 = vxpose.xlu0.b32.cont [5/16] 0.0, 128
      %592 = vxpose.xlu0.b32.cont [6/16] 0.0, 128
      %593 = vxpose.xlu0.b32.cont [7/16] 0.0, 128
      %594 = vxpose.xlu0.b32.cont [8/16] 0.0, 128
      %595 = vxpose.xlu0.b32.cont [9/16] 0.0, 128
      %596 = vxpose.xlu0.b32.cont [10/16] 0.0, 128
      %597 = vxpose.xlu0.b32.cont [11/16] 0.0, 128
      %598 = vxpose.xlu0.b32.cont [12/16] 0.0, 128
      %599 = vxpose.xlu0.b32.cont [13/16] 0.0, 128
      %600 = vxpose.xlu0.b32.cont [14/16] 0.0, 128
      %601 = vxpose.xlu0.b32.cont [15/16] 0.0, 128
      %602 = vxpose.xlu0.b32.end [16/16] 0.0, 128
      %v603 = vpop.trf.xlu0
      %v604 = vpop.trf.xlu0
      %v605 = vpop.trf.xlu0
      %v606 = vpop.trf.xlu0
      %v607 = vpop.trf.xlu0
      %v608 = vpop.trf.xlu0
      %v609 = vpop.trf.xlu0
      %v610 = vpop.trf.xlu0
      %v611 = vpop.trf.xlu0
      %v612 = vpop.trf.xlu0
      %v613 = vpop.trf.xlu0
      %v614 = vpop.trf.xlu0
      %v615 = vpop.trf.xlu0
      %v616 = vpop.trf.xlu0
      %v617 = vpop.trf.xlu0
      %v618 = vpop.trf.xlu0
      %v619 = vmul.f32 %v603, %v414
      %v620 = vmul.f32 %v604, %v415
      %v621 = vadd.f32 %v619, %v396
      %v622 = vadd.f32 %v620, %v397
      %v623 = vsel %vm420, %v621, 0.0
      %624 = vadd.xlane.f32.xlu0 %v623
      %v625 = vpop.xlane.xlu0 %624
      %v626 = vsel %vm420, %v622, 0.0
      %627 = vadd.xlane.f32.xlu0 %v626
      %v628 = vpop.xlane.xlu0 %627
      %v629 = vrcp.pop %v625
      %v630 = vmul.f32 %v625, %v629
      %v631 = vsub.f32 1.0, %v630
      %v632 = vmul.f32 %v629, %v631
      %v633 = vadd.f32 %v629, %v632
      %vm634 = vweird.f32 %v625
      %vm635 = vweird.f32 %v629
      %vm636 = vmor %vm634, %vm635
      %v637 = vsel %vm636, %v629, %v633
      %v638 = vand.u32 2147483647, %v625
      %vm639 = vcmp.eq.f32.partialorder %v638, 8.507059e+37
      %v640 = vand.u32 %v625, 2147483648
      %v641 = vor.u32 1.1754944e-38, %v640
      %v642 = vsel %vm639, %v641, %v637
      %v643 = vmul.f32 1.0, %v642
      %v644 = vrcp.pop %v628
      %v645 = vmul.f32 %v628, %v644
      %v646 = vsub.f32 1.0, %v645
      %v647 = vmul.f32 %v644, %v646
      %v648 = vadd.f32 %v644, %v647
      %vm649 = vweird.f32 %v628
      %vm650 = vweird.f32 %v644
      %vm651 = vmor %vm649, %vm650
      %v652 = vsel %vm651, %v644, %v648
      %v653 = vand.u32 2147483647, %v628
      %vm654 = vcmp.eq.f32.partialorder %v653, 8.507059e+37
      %v655 = vand.u32 %v628, 2147483648
      %v656 = vor.u32 1.1754944e-38, %v655
      %v657 = vsel %vm654, %v656, %v652
      %v658 = vmul.f32 1.0, %v657
      %v659 = vmul.f32 %v621, %v643
      %v660 = vmul.f32 %v622, %v658
      %v661 = vmul.f32 %v659, %v414
      %v662 = vmul.f32 %v660, %v415
      %v663 = vadd.f32 %v661, %v396
      %v664 = vadd.f32 %v662, %v397
      %v665 = vadd.f32 %v461, %v507
      %v666 = vadd.f32 %v462, %v508
      %v667 = vmul.f32 %v665, %v414
      %v668 = vmul.f32 %v666, %v415
      %v669 = vadd.f32 %v667, %v396
      %v670 = vadd.f32 %v668, %v397
      %v671 = vsel %vm420, %v669, 0.0
      %672 = vadd.xlane.f32.xlu0 %v671
      %v673 = vpop.xlane.xlu0 %672
      %v674 = vsel %vm420, %v670, 0.0
      %675 = vadd.xlane.f32.xlu0 %v674
      %v676 = vpop.xlane.xlu0 %675
      %v677 = vrcp.pop %v673
      %v678 = vmul.f32 %v673, %v677
      %v679 = vsub.f32 1.0, %v678
      %v680 = vmul.f32 %v677, %v679
      %v681 = vadd.f32 %v677, %v680
      %vm682 = vweird.f32 %v673
      %vm683 = vweird.f32 %v677
      %vm684 = vmor %vm682, %vm683
      %v685 = vsel %vm684, %v677, %v681
      %v686 = vand.u32 2147483647, %v673
      %vm687 = vcmp.eq.f32.partialorder %v686, 8.507059e+37
      %v688 = vand.u32 %v673, 2147483648
      %v689 = vor.u32 1.1754944e-38, %v688
      %v690 = vsel %vm687, %v689, %v685
      %v691 = vmul.f32 1.0, %v690
      %v692 = vrcp.pop %v676
      %v693 = vmul.f32 %v676, %v692
      %v694 = vsub.f32 1.0, %v693
      %v695 = vmul.f32 %v692, %v694
      %v696 = vadd.f32 %v692, %v695
      %vm697 = vweird.f32 %v676
      %vm698 = vweird.f32 %v692
      %vm699 = vmor %vm697, %vm698
      %v700 = vsel %vm699, %v692, %v696
      %v701 = vand.u32 2147483647, %v676
      %vm702 = vcmp.eq.f32.partialorder %v701, 8.507059e+37
      %v703 = vand.u32 %v676, 2147483648
      %v704 = vor.u32 1.1754944e-38, %v703
      %v705 = vsel %vm702, %v704, %v700
      %v706 = vmul.f32 1.0, %v705
      %v707 = vmul.f32 %v669, %v691
      %v708 = vmul.f32 %v670, %v706
      %v709 = vmul.f32 %v707, %v414
      %v710 = vmul.f32 %v708, %v415
      %v711 = vadd.f32 %v709, %v396
      %v712 = vadd.f32 %v710, %v397
      %v713 = vpack.c.bf16 %v711, %v711
      %v714 = vpack.c.bf16 %v712, %v712
      %v715 = vadd.f32 %v585, %v663
      %v716 = vadd.f32 %v586, %v664
      %v717 = vmul.f32 %v715, %v414
      %v718 = vmul.f32 %v716, %v415
      %v719 = vadd.f32 %v717, %v396
      %v720 = vadd.f32 %v718, %v397
      %v721 = vsel %vm420, %v719, 0.0
      %722 = vadd.xlane.f32.xlu0 %v721
      %v723 = vpop.xlane.xlu0 %722
      %v724 = vsel %vm420, %v720, 0.0
      %725 = vadd.xlane.f32.xlu0 %v724
      %v726 = vpop.xlane.xlu0 %725
      %v727 = vrcp.pop %v723
      %v728 = vmul.f32 %v723, %v727
      %v729 = vsub.f32 1.0, %v728
      %v730 = vmul.f32 %v727, %v729
      %v731 = vadd.f32 %v727, %v730
      %vm732 = vweird.f32 %v723
      %vm733 = vweird.f32 %v727
      %vm734 = vmor %vm732, %vm733
      %v735 = vsel %vm734, %v727, %v731
      %v736 = vand.u32 2147483647, %v723
      %vm737 = vcmp.eq.f32.partialorder %v736, 8.507059e+37
      %v738 = vand.u32 %v723, 2147483648
      %v739 = vor.u32 1.1754944e-38, %v738
      %v740 = vsel %vm737, %v739, %v735
      %v741 = vmul.f32 1.0, %v740
      %v742 = vrcp.pop %v726
      %v743 = vmul.f32 %v726, %v742
      %v744 = vsub.f32 1.0, %v743
      %v745 = vmul.f32 %v742, %v744
      %v746 = vadd.f32 %v742, %v745
      %vm747 = vweird.f32 %v726
      %vm748 = vweird.f32 %v742
      %vm749 = vmor %vm747, %vm748
      %v750 = vsel %vm749, %v742, %v746
      %v751 = vand.u32 2147483647, %v726
      %vm752 = vcmp.eq.f32.partialorder %v751, 8.507059e+37
      %v753 = vand.u32 %v726, 2147483648
      %v754 = vor.u32 1.1754944e-38, %v753
      %v755 = vsel %vm752, %v754, %v750
      %v756 = vmul.f32 1.0, %v755
      %v757 = vmul.f32 %v719, %v741
      %v758 = vmul.f32 %v720, %v756
      %v759 = vmul.f32 %v757, %v414
      %v760 = vmul.f32 %v758, %v415
      %v761 = vadd.f32 %v759, %v396
      %v762 = vadd.f32 %v760, %v397
      %v763 = vpack.c.bf16 %v761, %v761
      %v764 = vpack.c.bf16 %v762, %v762
      %v765 = vld [vmem:[%s7] sm:$0x1]
      %v766 = vld [vmem:[%s7 + $0x1] sm:$0x1]
      %v767 = vld [vmem:[%s5] sm:$0xf]
      %v768 = vld [vmem:[%s5 + $0x4] sm:$0xf]
      %v769 = vld [vmem:[%s5 + $0x8] sm:$0xf]
      %v770 = vld [vmem:[%s5 + $0xc] sm:$0xf]
      %v771 = vld [vmem:[%s6] sm:$0x1]
      %v772 = vpack.c.bf16 %v382, %v381
      %v777 = vunpack.c.l.b16 %v767
      %v778 = vunpack.c.l.b16 %v768
      %v779 = vunpack.c.l.b16 %v769
      %v780 = vunpack.c.l.b16 %v770
      %v781 = vpack.c.b16 %v778, %v777
      %v782 = vpack.c.b16 %v780, %v779
      %vm785 = vcmask 261120
      %v787 = vsel %vm785, %v772, 0
      %789 = vmatpush.bf16.msra.mxu0 0
      %790 = vmatpush.bf16.msra.mxu0 0
      %791 = vmatpush.bf16.msra.mxu0 0
      %792 = vmatpush.bf16.msra.mxu0 0
      %793 = vmatpush.bf16.msra.mxu0 0
      %794 = vmatpush.bf16.msra.mxu0 0
      %795 = vmatpush.bf16.msra.mxu0 %v782
      %796 = vmatpush.bf16.msra.mxu0 %v781
      %797 = vmatmul.bf16.gmra.mxu0 %v787
      %v798 = vpop.f32.mrf.mxu0
      %v799 = vadd.f32 0.0, %v798
      %v800 = vpop.f32.mrf.mxu0
      %v801 = vadd.f32 0.0, %v800
      %802 = vdwg.mxu0
      %v803 = vpack.c.bf16 %v799, %v799
      %v804 = vpack.c.bf16 %v801, %v801
      %v805 = vperm.slane %v771, 0
      %v808 = vunpack.c.l.b16 %v713
      %v809 = vunpack.c.l.b16 %v714
      %v810 = vpack.c.b16 %v809, %v808
      %v813 = vunpack.c.l.b16 %v803
      %v814 = vunpack.c.l.b16 %v804
      %v815 = vpack.c.b16 %v814, %v813
      %v818 = vsel %vm420, %v810, 0
      %820 = vmatpush.bf16.msra.mxu0 0
      %821 = vmatpush.bf16.msra.mxu0 0
      %822 = vmatpush.bf16.msra.mxu0 0
      %823 = vmatpush.bf16.msra.mxu0 0
      %824 = vmatpush.bf16.msra.mxu0 0
      %825 = vmatpush.bf16.msra.mxu0 0
      %826 = vmatpush.bf16.msra.mxu0 0
      %827 = vmatpush.bf16.msra.mxu0 %v815
      %828 = vmatmul.bf16.gmra.mxu0 %v818
      %v829 = vpop.f32.mrf.mxu0
      %v830 = vadd.f32 %v805, %v829
      %v831 = vpop.f32.mrf.mxu0
      %v832 = vadd.f32 %v805, %v831
      %833 = vdwg.mxu0
      %v834 = vmax.f32 %v830, 0.0
      %v835 = vmax.f32 %v832, 0.0
      %v836 = vadd.f32 %v834, %v381
      %v837 = vadd.f32 %v835, %v382
      %v838 = vsel %vm785, %v836, 0.0
      %839 = vadd.xlane.f32.xlu0 %v838
      %v840 = vpop.xlane.xlu0 %839
      %v841 = vsel %vm785, %v837, 0.0
      %842 = vadd.xlane.f32.xlu0 %v841
      %v843 = vpop.xlane.xlu0 %842
      %v844 = vrcp.pop 32.0
      %v845 = vmul.f32 32.0, %v844
      %v846 = vsub.f32 1.0, %v845
      %v847 = vmul.f32 %v844, %v846
      %v848 = vadd.f32 %v844, %v847
      %vm849 = vweird.f32 %v844
      %v850 = vsel %vm849, %v844, %v848
      %v851 = vmul.f32 %v840, %v850
      %v852 = vmul.f32 %v843, %v850
      %v853 = vsub.f32 %v836, %v851
      %v854 = vsub.f32 %v837, %v852
      %v855 = vmul.f32 %v853, %v853
      %v856 = vmul.f32 %v854, %v854
      %v857 = vsel %vm785, %v855, 0.0
      %858 = vadd.xlane.f32.xlu0 %v857
      %v859 = vpop.xlane.xlu0 %858
      %v860 = vsel %vm785, %v856, 0.0
      %861 = vadd.xlane.f32.xlu0 %v860
      %v862 = vpop.xlane.xlu0 %861
      %v863 = vmul.f32 %v859, %v850
      %v864 = vmul.f32 %v862, %v850
      %v865 = vadd.f32 %v863, 1e-05
      %v866 = vadd.f32 %v864, 1e-05
      %v867 = vrsqrt.pop %v865
      %v868 = vmul.f32 %v867, %v865
      %v869 = vmul.f32 %v868, %v867
      %v870 = vmul.f32 0.5, %v869
      %v871 = vsub.f32 1.5, %v870
      %v872 = vmul.f32 %v867, %v871
      %vm873 = vweird.f32 %v865
      %vm874 = vweird.f32 %v867
      %vm875 = vmor %vm873, %vm874
      %v876 = vsel %vm875, %v867, %v872
      %v877 = vrsqrt.pop %v866
      %v878 = vmul.f32 %v877, %v866
      %v879 = vmul.f32 %v878, %v877
      %v880 = vmul.f32 0.5, %v879
      %v881 = vsub.f32 1.5, %v880
      %v882 = vmul.f32 %v877, %v881
      %vm883 = vweird.f32 %v866
      %vm884 = vweird.f32 %v877
      %vm885 = vmor %vm883, %vm884
      %v886 = vsel %vm885, %v877, %v882
      %v887 = vmul.f32 %v853, %v876
      %v888 = vmul.f32 %v854, %v886
      %v889 = vperm.slane %v765, 0
      %v890 = vmul.f32 %v887, %v889
      %v891 = vmul.f32 %v888, %v889
      %v892 = vperm.slane %v766, 0
      %v893 = vadd.f32 %v890, %v892
      %v894 = vadd.f32 %v891, %v892
      %s895 = scalar_lea.vmem %s5, 16
      %v896 = vld [vmem:[%s895] sm:$0xf]
      %v897 = vld [vmem:[%s895 + $0x4] sm:$0xf]
      %v898 = vld [vmem:[%s895 + $0x8] sm:$0xf]
      %v899 = vld [vmem:[%s895 + $0xc] sm:$0xf]
      %v900 = vld [vmem:[%s6 + $0x1] sm:$0x1]
      %v901 = vpack.c.bf16 %v894, %v893
      %v906 = vunpack.c.l.b16 %v896
      %v907 = vunpack.c.l.b16 %v897
      %v908 = vunpack.c.l.b16 %v898
      %v909 = vunpack.c.l.b16 %v899
      %v910 = vpack.c.b16 %v907, %v906
      %v911 = vpack.c.b16 %v909, %v908
      %v915 = vsel %vm785, %v901, 0
      %917 = vmatpush.bf16.msra.mxu0 0
      %918 = vmatpush.bf16.msra.mxu0 0
      %919 = vmatpush.bf16.msra.mxu0 0
      %920 = vmatpush.bf16.msra.mxu0 0
      %921 = vmatpush.bf16.msra.mxu0 0
      %922 = vmatpush.bf16.msra.mxu0 0
      %923 = vmatpush.bf16.msra.mxu0 %v911
      %924 = vmatpush.bf16.msra.mxu0 %v910
      %925 = vmatmul.bf16.gmra.mxu0 %v915
      %v926 = vpop.f32.mrf.mxu0
      %v927 = vadd.f32 0.0, %v926
      %v928 = vpop.f32.mrf.mxu0
      %v929 = vadd.f32 0.0, %v928
      %930 = vdwg.mxu0
      %v931 = vpack.c.bf16 %v927, %v927
      %v932 = vpack.c.bf16 %v929, %v929
      %v933 = vperm.slane %v900, 0
      %v936 = vunpack.c.l.b16 %v763
      %v937 = vunpack.c.l.b16 %v764
      %v938 = vpack.c.b16 %v937, %v936
      %v941 = vunpack.c.l.b16 %v931
      %v942 = vunpack.c.l.b16 %v932
      %v943 = vpack.c.b16 %v942, %v941
      %v946 = vsel %vm420, %v938, 0
      %948 = vmatpush.bf16.msra.mxu0 0
      %949 = vmatpush.bf16.msra.mxu0 0
      %950 = vmatpush.bf16.msra.mxu0 0
      %951 = vmatpush.bf16.msra.mxu0 0
      %952 = vmatpush.bf16.msra.mxu0 0
      %953 = vmatpush.bf16.msra.mxu0 0
      %954 = vmatpush.bf16.msra.mxu0 0
      %955 = vmatpush.bf16.msra.mxu0 %v943
      %956 = vmatmul.bf16.gmra.mxu0 %v946
      %v957 = vpop.f32.mrf.mxu0
      %v958 = vadd.f32 %v933, %v957
      %v959 = vpop.f32.mrf.mxu0
      %v960 = vadd.f32 %v933, %v959
      %961 = vdwg.mxu0
      %v962 = vmax.f32 %v958, 0.0
      %v963 = vmax.f32 %v960, 0.0
      %v964 = vadd.f32 %v962, %v381
      %v965 = vadd.f32 %v963, %v382
      %v966 = vsel %vm785, %v964, 0.0
      %967 = vadd.xlane.f32.xlu0 %v966
      %v968 = vpop.xlane.xlu0 %967
      %v969 = vsel %vm785, %v965, 0.0
      %970 = vadd.xlane.f32.xlu0 %v969
      %v971 = vpop.xlane.xlu0 %970
      %v972 = vmul.f32 %v968, %v850
      %v973 = vmul.f32 %v971, %v850
      %v974 = vsub.f32 %v964, %v972
      %v975 = vsub.f32 %v965, %v973
      %v976 = vmul.f32 %v974, %v974
      %v977 = vmul.f32 %v975, %v975
      %v978 = vsel %vm785, %v976, 0.0
      %979 = vadd.xlane.f32.xlu0 %v978
      %v980 = vpop.xlane.xlu0 %979
      %v981 = vsel %vm785, %v977, 0.0
      %982 = vadd.xlane.f32.xlu0 %v981
      %v983 = vpop.xlane.xlu0 %982
      %v984 = vmul.f32 %v980, %v850
      %v985 = vmul.f32 %v983, %v850
      %v986 = vadd.f32 %v984, 1e-05
      %v987 = vadd.f32 %v985, 1e-05
      %v988 = vrsqrt.pop %v986
      %v989 = vmul.f32 %v988, %v986
      %v990 = vmul.f32 %v989, %v988
      %v991 = vmul.f32 0.5, %v990
      %v992 = vsub.f32 1.5, %v991
      %v993 = vmul.f32 %v988, %v992
      %vm994 = vweird.f32 %v986
      %vm995 = vweird.f32 %v988
      %vm996 = vmor %vm994, %vm995
      %v997 = vsel %vm996, %v988, %v993
      %v998 = vrsqrt.pop %v987
      %v999 = vmul.f32 %v998, %v987
      %v1000 = vmul.f32 %v999, %v998
      %v1001 = vmul.f32 0.5, %v1000
      %v1002 = vsub.f32 1.5, %v1001
      %v1003 = vmul.f32 %v998, %v1002
      %vm1004 = vweird.f32 %v987
      %vm1005 = vweird.f32 %v998
      %vm1006 = vmor %vm1004, %vm1005
      %v1007 = vsel %vm1006, %v998, %v1003
      %v1008 = vmul.f32 %v974, %v997
      %v1009 = vmul.f32 %v975, %v1007
      %v1010 = vmul.f32 %v1008, %v889
      %v1011 = vmul.f32 %v1009, %v889
      %v1012 = vadd.f32 %v1010, %v892
      %v1013 = vadd.f32 %v1011, %v892
      %s1014 = scalar_lea.vmem %s5, 32
      %v1015 = vld [vmem:[%s1014] sm:$0xf]
      %v1016 = vld [vmem:[%s1014 + $0x4] sm:$0xf]
      %v1017 = vld [vmem:[%s1014 + $0x8] sm:$0xf]
      %v1018 = vld [vmem:[%s1014 + $0xc] sm:$0xf]
      %v1019 = vld [vmem:[%s6 + $0x2] sm:$0x1]
      %v1020 = vpack.c.bf16 %v1013, %v1012
      %v1025 = vunpack.c.l.b16 %v1015
      %v1026 = vunpack.c.l.b16 %v1016
      %v1027 = vunpack.c.l.b16 %v1017
      %v1028 = vunpack.c.l.b16 %v1018
      %v1029 = vpack.c.b16 %v1026, %v1025
      %v1030 = vpack.c.b16 %v1028, %v1027
      %v1034 = vsel %vm785, %v1020, 0
      %1036 = vmatpush.bf16.msra.mxu0 0
      %1037 = vmatpush.bf16.msra.mxu0 0
      %1038 = vmatpush.bf16.msra.mxu0 0
      %1039 = vmatpush.bf16.msra.mxu0 0
      %1040 = vmatpush.bf16.msra.mxu0 0
      %1041 = vmatpush.bf16.msra.mxu0 0
      %1042 = vmatpush.bf16.msra.mxu0 %v1030
      %1043 = vmatpush.bf16.msra.mxu0 %v1029
      %1044 = vmatmul.bf16.gmra.mxu0 %v1034
      %v1045 = vpop.f32.mrf.mxu0
      %v1046 = vadd.f32 0.0, %v1045
      %v1047 = vpop.f32.mrf.mxu0
      %v1048 = vadd.f32 0.0, %v1047
      %1049 = vdwg.mxu0
      %v1050 = vpack.c.bf16 %v1046, %v1046
      %v1051 = vpack.c.bf16 %v1048, %v1048
      %v1052 = vperm.slane %v1019, 0
      %v1055 = vunpack.c.l.b16 %v1050
      %v1056 = vunpack.c.l.b16 %v1051
      %v1057 = vpack.c.b16 %v1056, %v1055
      %1059 = vmatpush.bf16.msra.mxu0 0
      %1060 = vmatpush.bf16.msra.mxu0 0
      %1061 = vmatpush.bf16.msra.mxu0 0
      %1062 = vmatpush.bf16.msra.mxu0 0
      %1063 = vmatpush.bf16.msra.mxu0 0
      %1064 = vmatpush.bf16.msra.mxu0 0
      %1065 = vmatpush.bf16.msra.mxu0 0
      %1066 = vmatpush.bf16.msra.mxu0 %v1057
      %1067 = vmatmul.bf16.gmra.mxu0 %v818
      %v1068 = vpop.f32.mrf.mxu0
      %v1069 = vadd.f32 %v1052, %v1068
      %v1070 = vpop.f32.mrf.mxu0
      %v1071 = vadd.f32 %v1052, %v1070
      %1072 = vdwg.mxu0
      %v1073 = vmax.f32 %v1069, 0.0
      %v1074 = vmax.f32 %v1071, 0.0
      %v1075 = vadd.f32 %v1073, %v381
      %v1076 = vadd.f32 %v1074, %v382
      %v1077 = vsel %vm785, %v1075, 0.0
      %1078 = vadd.xlane.f32.xlu0 %v1077
      %v1079 = vpop.xlane.xlu0 %1078
      %v1080 = vsel %vm785, %v1076, 0.0
      %1081 = vadd.xlane.f32.xlu0 %v1080
      %v1082 = vpop.xlane.xlu0 %1081
      %v1083 = vmul.f32 %v1079, %v850
      %v1084 = vmul.f32 %v1082, %v850
      %v1085 = vsub.f32 %v1075, %v1083
      %v1086 = vsub.f32 %v1076, %v1084
      %v1087 = vmul.f32 %v1085, %v1085
      %v1088 = vmul.f32 %v1086, %v1086
      %v1089 = vsel %vm785, %v1087, 0.0
      %1090 = vadd.xlane.f32.xlu0 %v1089
      %v1091 = vpop.xlane.xlu0 %1090
      %v1092 = vsel %vm785, %v1088, 0.0
      %1093 = vadd.xlane.f32.xlu0 %v1092
      %v1094 = vpop.xlane.xlu0 %1093
      %v1095 = vmul.f32 %v1091, %v850
      %v1096 = vmul.f32 %v1094, %v850
      %v1097 = vadd.f32 %v1095, 1e-05
      %v1098 = vadd.f32 %v1096, 1e-05
      %v1099 = vrsqrt.pop %v1097
      %v1100 = vmul.f32 %v1099, %v1097
      %v1101 = vmul.f32 %v1100, %v1099
      %v1102 = vmul.f32 0.5, %v1101
      %v1103 = vsub.f32 1.5, %v1102
      %v1104 = vmul.f32 %v1099, %v1103
      %vm1105 = vweird.f32 %v1097
      %vm1106 = vweird.f32 %v1099
      %vm1107 = vmor %vm1105, %vm1106
      %v1108 = vsel %vm1107, %v1099, %v1104
      %v1109 = vrsqrt.pop %v1098
      %v1110 = vmul.f32 %v1109, %v1098
      %v1111 = vmul.f32 %v1110, %v1109
      %v1112 = vmul.f32 0.5, %v1111
      %v1113 = vsub.f32 1.5, %v1112
      %v1114 = vmul.f32 %v1109, %v1113
      %vm1115 = vweird.f32 %v1098
      %vm1116 = vweird.f32 %v1109
      %vm1117 = vmor %vm1115, %vm1116
      %v1118 = vsel %vm1117, %v1109, %v1114
      %v1119 = vmul.f32 %v1085, %v1108
      %v1120 = vmul.f32 %v1086, %v1118
      %v1121 = vmul.f32 %v1119, %v889
      %v1122 = vmul.f32 %v1120, %v889
      %v1123 = vadd.f32 %v1121, %v892
      %v1124 = vadd.f32 %v1122, %v892
      %s1125 = scalar_lea.vmem %s5, 48
      %v1126 = vld [vmem:[%s1125] sm:$0xf]
      %v1127 = vld [vmem:[%s1125 + $0x4] sm:$0xf]
      %v1128 = vld [vmem:[%s1125 + $0x8] sm:$0xf]
      %v1129 = vld [vmem:[%s1125 + $0xc] sm:$0xf]
      %v1130 = vld [vmem:[%s6 + $0x3] sm:$0x1]
      %v1131 = vpack.c.bf16 %v1124, %v1123
      %v1136 = vunpack.c.l.b16 %v1126
      %v1137 = vunpack.c.l.b16 %v1127
      %v1138 = vunpack.c.l.b16 %v1128
      %v1139 = vunpack.c.l.b16 %v1129
      %v1140 = vpack.c.b16 %v1137, %v1136
      %v1141 = vpack.c.b16 %v1139, %v1138
      %v1145 = vsel %vm785, %v1131, 0
      %1147 = vmatpush.bf16.msra.mxu0 0
      %1148 = vmatpush.bf16.msra.mxu0 0
      %1149 = vmatpush.bf16.msra.mxu0 0
      %1150 = vmatpush.bf16.msra.mxu0 0
      %1151 = vmatpush.bf16.msra.mxu0 0
      %1152 = vmatpush.bf16.msra.mxu0 0
      %1153 = vmatpush.bf16.msra.mxu0 %v1141
      %1154 = vmatpush.bf16.msra.mxu0 %v1140
      %1155 = vmatmul.bf16.gmra.mxu0 %v1145
      %v1156 = vpop.f32.mrf.mxu0
      %v1157 = vadd.f32 0.0, %v1156
      %v1158 = vpop.f32.mrf.mxu0
      %v1159 = vadd.f32 0.0, %v1158
      %1160 = vdwg.mxu0
      %v1161 = vpack.c.bf16 %v1157, %v1157
      %v1162 = vpack.c.bf16 %v1159, %v1159
      %v1163 = vperm.slane %v1130, 0
      %v1166 = vunpack.c.l.b16 %v1161
      %v1167 = vunpack.c.l.b16 %v1162
      %v1168 = vpack.c.b16 %v1167, %v1166
      %1170 = vmatpush.bf16.msra.mxu0 0
      %1171 = vmatpush.bf16.msra.mxu0 0
      %1172 = vmatpush.bf16.msra.mxu0 0
      %1173 = vmatpush.bf16.msra.mxu0 0
      %1174 = vmatpush.bf16.msra.mxu0 0
      %1175 = vmatpush.bf16.msra.mxu0 0
      %1176 = vmatpush.bf16.msra.mxu0 0
      %1177 = vmatpush.bf16.msra.mxu0 %v1168
      %1178 = vmatmul.bf16.gmra.mxu0 %v946
      %v1179 = vpop.f32.mrf.mxu0
      %v1180 = vadd.f32 %v1163, %v1179
      %v1181 = vpop.f32.mrf.mxu0
      %v1182 = vadd.f32 %v1163, %v1181
      %1183 = vdwg.mxu0
      %v1184 = vmax.f32 %v1180, 0.0
      %v1185 = vmax.f32 %v1182, 0.0
      %v1186 = vadd.f32 %v1184, %v381
      %v1187 = vadd.f32 %v1185, %v382
      %v1188 = vsel %vm785, %v1186, 0.0
      %1189 = vadd.xlane.f32.xlu0 %v1188
      %v1190 = vpop.xlane.xlu0 %1189
      %v1191 = vsel %vm785, %v1187, 0.0
      %1192 = vadd.xlane.f32.xlu0 %v1191
      %v1193 = vpop.xlane.xlu0 %1192
      %v1194 = vmul.f32 %v1190, %v850
      %v1195 = vmul.f32 %v1193, %v850
      %v1196 = vsub.f32 %v1186, %v1194
      %v1197 = vsub.f32 %v1187, %v1195
      %v1198 = vmul.f32 %v1196, %v1196
      %v1199 = vmul.f32 %v1197, %v1197
      %v1200 = vsel %vm785, %v1198, 0.0
      %1201 = vadd.xlane.f32.xlu0 %v1200
      %v1202 = vpop.xlane.xlu0 %1201
      %v1203 = vsel %vm785, %v1199, 0.0
      %1204 = vadd.xlane.f32.xlu0 %v1203
      %v1205 = vpop.xlane.xlu0 %1204
      %v1206 = vmul.f32 %v1202, %v850
      %v1207 = vmul.f32 %v1205, %v850
      %v1208 = vadd.f32 %v1206, 1e-05
      %v1209 = vadd.f32 %v1207, 1e-05
      %v1210 = vrsqrt.pop %v1208
      %v1211 = vmul.f32 %v1210, %v1208
      %v1212 = vmul.f32 %v1211, %v1210
      %v1213 = vmul.f32 0.5, %v1212
      %v1214 = vsub.f32 1.5, %v1213
      %v1215 = vmul.f32 %v1210, %v1214
      %vm1216 = vweird.f32 %v1208
      %vm1217 = vweird.f32 %v1210
      %vm1218 = vmor %vm1216, %vm1217
      %v1219 = vsel %vm1218, %v1210, %v1215
      %v1220 = vrsqrt.pop %v1209
      %v1221 = vmul.f32 %v1220, %v1209
      %v1222 = vmul.f32 %v1221, %v1220
      %v1223 = vmul.f32 0.5, %v1222
      %v1224 = vsub.f32 1.5, %v1223
      %v1225 = vmul.f32 %v1220, %v1224
      %vm1226 = vweird.f32 %v1209
      %vm1227 = vweird.f32 %v1220
      %vm1228 = vmor %vm1226, %vm1227
      %v1229 = vsel %vm1228, %v1220, %v1225
      %v1230 = vmul.f32 %v1196, %v1219
      %v1231 = vmul.f32 %v1197, %v1229
      %v1232 = vmul.f32 %v1230, %v889
      %v1233 = vmul.f32 %v1231, %v889
      %v1234 = vadd.f32 %v1232, %v892
      %v1235 = vadd.f32 %v1233, %v892
      %v1236 = vperm.slane %v384, 0
      %v1237 = vlaneseq
      %v1238 = vshrl.u32 %v1237, 7
      %1240 = vset.pattern.permute.xlu0 %v1238
      %1241 = vperm.xlu0 %1240, %v1236
      %v1242 = vpop.permute.xlu0 %1241
      %v1243 = vlaneseq
      %v1244 = vshrl.u32 %v1243, 7
      %v1245 = vadd.s32 %v1244, 8
      %1246 = vset.pattern.permute.xlu0 %v1245
      %1247 = vperm.xlu0 %1246, %v1236
      %v1248 = vpop.permute.xlu0 %1247
      %v1249 = vmul.f32 %v1234, %v1242
      %v1250 = vmul.f32 %v1235, %v1248
      %vm1251 = vcmask 122880
      %v1252 = vsel %vm1251, %v384, 0.0
      %1253 = vadd.xlane.f32.xlu0 %v1252
      %v1254 = vpop.xlane.xlu0 %1253
      %v1255 = vmax.f32 %v1254, 1e-12
      %v1256 = vsel %vm785, %v1249, 0.0
      %v1257 = vsel %vm785, %v1250, 0.0
      %v1258 = vadd.f32 %v1256, %v1257
      %v1259 = vrot.slane %v1258, 4
      %v1260 = vadd.f32 %v1258, %v1259
      %v1261 = vrot.slane %v1260, 2
      %v1262 = vadd.f32 %v1260, %v1261
      %v1263 = vrot.slane %v1262, 1
      %v1264 = vadd.f32 %v1262, %v1263
      %v1265 = vrcp.pop %v1255
      %v1266 = vmul.f32 %v1255, %v1265
      %v1267 = vsub.f32 1.0, %v1266
      %v1268 = vmul.f32 %v1265, %v1267
      %v1269 = vadd.f32 %v1265, %v1268
      %vm1270 = vweird.f32 %v1255
      %vm1271 = vweird.f32 %v1265
      %vm1272 = vmor %vm1270, %vm1271
      %v1273 = vsel %vm1272, %v1265, %v1269
      %v1274 = vand.u32 2147483647, %v1255
      %vm1275 = vcmp.eq.f32.partialorder %v1274, 8.507059e+37
      %v1276 = vand.u32 %v1255, 2147483648
      %v1277 = vor.u32 1.1754944e-38, %v1276
      %v1278 = vsel %vm1275, %v1277, %v1273
      %v1279 = vmul.f32 %v1264, %v1278
      %vm1280 = vcmask 253952
      %1281 = vst.msk [vmem:[%s369] sm:$0x1] %vm1280, %v1279
      %p1282 = scmp.lt.s32.totalorder %s19, 1
      %s1283 = scalar_select %p1282, %s19, 1
      %s1284 = scalar_lea.vmem %s8, %s1283
      // Predicated region
      $region53: #{absa_forward.1} parent=51 // pred_check
        %p1285 = pneg %p230
      $region54: #{absa_forward.1} parent=51 // pred_check_branch
        %1287 = sbr.rel (%p1285) target = $region56
      $region55: #{absa_forward.1} parent=51 // pred_region
        _
      $region56: #{absa_forward.1} parent=51 // pred_fallthru
        _
    $region52: #{absa_forward.1} parent=5 // pred_fallthru
      _
    %p1288 = scmp.le.s32.totalorder 2, %s14
    // Predicated region
    $region57: #{absa_forward.1} parent=5 // pred_check
      %p1289 = pneg %p1288
    $region58: #{absa_forward.1} parent=5 // pred_check_branch
      %1291 = sbr.rel (%p1289) target = $region60
    $region59: #{absa_forward.1} parent=5 // pred_region
      %s1292 = ssub.s32 %s14, 2
      // Predicated region
      $region61: #{absa_forward.1} parent=59 // pred_check
        %p1293 = pneg %p236
      $region62: #{absa_forward.1} parent=59 // pred_check_branch
        %1295 = sbr.rel (%p1293) target = $region64
      $region63: #{absa_forward.1} parent=59 // pred_region
        %p1296 = scmp.lt.s32.totalorder %s20, 1
        %s1297 = scalar_select %p1296, %s20, 1
        %s1298 = scalar_lea.vmem %s8, %s1297
      $region64: #{absa_forward.1} parent=59 // pred_fallthru
        _
    $region60: #{absa_forward.1} parent=5 // pred_fallthru
      _
  $region6: #{absa_forward.1} parent=0 // loop_footer
    %s18 = sadd.s32 1, %s14
  $region7: #{absa_forward.1} parent=0 // loop_footer_branch
    %13 = sbr.rel target = $region3
  $region8: #{absa_forward.1} parent=0 // loop_exit
    _

</llo_original>
